<compile_context>
chip_gen: v7x
topology: tpu7x:2x2x1
jax: 0.10.0
libtpu: 0.0.40
codegen_flags: <defaults>
</compile_context>

<pallas_src>
import jax
import jax.numpy as jnp
from jax.experimental import pallas as pl
from jax.experimental.pallas import tpu as pltpu


def _round_up(v: int, m: int) -> int:
    return (v + m - 1) // m * m


def resblock_kernel(x_ref, w1_ref, b1_ref, w2_ref, b2_ref, alpha_ref, o_ref):
    # h = fc1(silu(x))  — silu in f32 (safe on v5e), MXU operands in the
    # weight dtype (bf16 on the fast path), f32 accumulation.
    xf = x_ref[...].astype(jnp.float32)
    a1 = (xf * jax.nn.sigmoid(xf)).astype(w1_ref.dtype)
    # NOTE: xf is dead here — the residual re-reads x_ref below, so the f32
    # x tile is not live across the matmuls.
    h = jnp.dot(a1, w1_ref[...], preferred_element_type=jnp.float32)
    h = h + b1_ref[...].astype(jnp.float32)

    # h = fc2(silu(h))
    a2 = (h * jax.nn.sigmoid(h)).astype(w2_ref.dtype)
    h = jnp.dot(a2, w2_ref[...], preferred_element_type=jnp.float32)
    h = h + b2_ref[...].astype(jnp.float32)

    # out = x + alpha * h   (alpha is a scalar in SMEM; x re-read from VMEM)
    alpha = alpha_ref[0]
    o_ref[...] = (x_ref[...].astype(jnp.float32) + alpha * h).astype(o_ref.dtype)


def _vmem_capacity_bytes() -> int:
    """Physical per-TensorCore VMEM; conservative default if query fails."""
    try:
        info = pltpu.get_tpu_info()
        cap = getattr(info, "vmem_capacity_bytes", None)
        if cap:
            return int(cap)
    except Exception:
        pass
    return 64 << 20  # v7x per-TC VMEM — safe lower bound for all generations


def _pick_tm(n, width, bneck, x_bytes, mm_bytes, resident_bytes, budget_bytes,
             prefer_multi_step):
    """Largest row tile (multiple of 8) whose working set fits the budget."""
    n8 = _round_up(max(n, 8), 8)
    for tm in (2048, 1024, 512, 256, 128, 64, 32, 16, 8):
        if prefer_multi_step and tm > 8 and 2 * tm > n8:
            # Keep >= 2 grid steps so both TensorCores (v7x) get work.
            continue
        tiles = 2 * 2 * tm * width * x_bytes                 # x + out, double-buffered
        # f32 temporaries live at once (h / bias-add / residual) plus the
        # lower-precision a1/a2 MXU operand copies.
        work = 4 * tm * (2 * width + bneck) + mm_bytes * tm * (width + bneck)
        if resident_bytes + tiles + work <= budget_bytes:
            return min(tm, n8)
    return 8


def resblock(x, w1, b1, w2, b2, alpha, *, tm=None, matmul_dtype=None,
             vmem_limit_bytes=None):
    """x: (N, width); w1: (width, bottleneck); w2: (bottleneck, width).

    Weights are stored pre-transposed as (in, out) relative to torch.nn.Linear.
    """
    n, width = x.shape
    bottleneck = w1.shape[1]
    assert w1.shape == (width, bottleneck)
    assert w2.shape == (bottleneck, width)
    assert b1.shape == (bottleneck,)
    assert b2.shape == (width,)

    # Optional fast MXU path: bf16 operands, f32 accumulation (v6e/v7x 3-4x).
    if matmul_dtype is not None:
        w1 = w1.astype(matmul_dtype)
        w2 = w2.astype(matmul_dtype)
    x_bytes = jnp.dtype(x.dtype).itemsize
    w_bytes = jnp.dtype(w1.dtype).itemsize

    # Generation-aware VMEM budget.
    cap = _vmem_capacity_bytes()
    if vmem_limit_bytes is None:
        vmem_limit_bytes = max(min(cap - (8 << 20), 100 << 20), 16 << 20)
    multi_core = cap <= (64 << 20)  # 64 MiB/TC => likely v7x (2 TCs/chip)
    budget = int((0.6 if multi_core else 0.75) * vmem_limit_bytes)

    # Resident operands (single-buffered via pl.Buffered(1)).
    resident_bytes = w_bytes * 2 * width * bottleneck + 4 * (width + bottleneck)
    if resident_bytes > budget:
        # TODO(synk): add a K/N-tiled variant (2-D grid, f32 VMEM accumulator,
        # pl.when init/finalize) for very large widths instead of erroring.
        raise ValueError("ResBlock weights exceed the resident-VMEM budget; "
                         "a K/N-tiled kernel variant is required.")

    if tm is None:
        tm = _pick_tm(n, width, bottleneck, x_bytes, w_bytes, resident_bytes,
                      budget, prefer_multi_step=multi_core)

    b1_2d = b1.reshape(1, bottleneck)
    b2_2d = b2.reshape(1, width)
    alpha_arr = jnp.asarray(alpha, jnp.float32).reshape(1)

    grid = (pl.cdiv(n, tm),)

    cost = pl.CostEstimate(
        flops=int(4 * n * width * bottleneck + 8 * n * (width + bottleneck)),
        transcendentals=int(n * (width + bottleneck)),
        bytes_accessed=int(2 * n * width * x_bytes
                           + 2 * w_bytes * width * bottleneck
                           + 4 * (width + bottleneck)),
    )

    def build(single_buffer_weights, limit):
        if single_buffer_weights:
            def wspec(shape):
                return pl.BlockSpec(shape, lambda i: (0,) * len(shape),
                                    pipeline_mode=pl.Buffered(1))
        else:
            def wspec(shape):
                return pl.BlockSpec(shape, lambda i: (0,) * len(shape))
        return pl.pallas_call(
            resblock_kernel,
            out_shape=jax.ShapeDtypeStruct((n, width), x.dtype),
            grid_spec=pltpu.PrefetchScalarGridSpec(
                num_scalar_prefetch=0,
                grid=grid,
                in_specs=[
                    pl.BlockSpec((tm, width), lambda i: (i, 0)),   # x tile
                    wspec((width, bottleneck)),                    # W1 (resident)
                    wspec((1, bottleneck)),                        # b1 (resident)
                    wspec((bottleneck, width)),                    # W2 (resident)
                    wspec((1, width)),                             # b2 (resident)
                    pl.BlockSpec(memory_space=pltpu.SMEM),         # alpha scalar
                ],
                out_specs=pl.BlockSpec((tm, width), lambda i: (i, 0)),
            ),
            compiler_params=pltpu.CompilerParams(
                dimension_semantics=("parallel",),
                vmem_limit_bytes=int(limit)),
            cost_estimate=cost,
        )

    args = (x, w1, b1_2d, w2, b2_2d, alpha_arr)
    try:
        return build(True, vmem_limit_bytes)(*args)
    except Exception:
        # Conservative fallback if pl.Buffered(1) / the VMEM limit is rejected
        # by the installed JAX / hardware: default double-buffering, modest
        # scoped-VMEM limit.
        return build(False, min(vmem_limit_bytes, 48 << 20))(*args)


def resblock_ref(x, w1, b1, w2, b2, alpha):
    h = jax.nn.silu(x) @ w1 + b1
    h = jax.nn.silu(h) @ w2 + b2
    return x + alpha * h


if __name__ == "__main__":
    # Small shapes consistent with the module; batch is intentionally ragged
    # (not a multiple of 8 or the tile) to exercise the masked edge tile.
    width, bottleneck, batch = 32, 16, 300

    key = jax.random.PRNGKey(0)
    kx, k1, kb1, k2, kb2 = jax.random.split(key, 5)

    x = jax.random.normal(kx, (batch, width), jnp.float32)

    # PyTorch Linear: fc1 weight (bottleneck, width), fc2 weight (width,
    # bottleneck) — stored pre-transposed here as (in, out).
    bound1 = 1.0 / jnp.sqrt(width)
    w1 = jax.random.uniform(k1, (width, bottleneck), jnp.float32, -bound1, bound1)
    b1 = jax.random.uniform(kb1, (bottleneck,), jnp.float32, -bound1, bound1)
    bound2 = 1.0 / jnp.sqrt(bottleneck)
    w2 = jax.random.uniform(k2, (bottleneck, width), jnp.float32, -bound2, bound2)
    b2 = jax.random.uniform(kb2, (width,), jnp.float32, -bound2, bound2)
    # The module initializes alpha = 0 (output would be the identity); use a
    # nonzero value so the residual branch is actually exercised.
    alpha = jnp.float32(0.5)

    ref = resblock_ref(x, w1, b1, w2, b2, alpha)

    # Exact path (f32 MXU operands) — tight tolerance.
    out = jax.block_until_ready(resblock(x, w1, b1, w2, b2, alpha))
    assert out.shape == (batch, width)
    assert jnp.allclose(out, ref, atol=1e-4, rtol=1e-4), (
        float(jnp.max(jnp.abs(out - ref))))

    # Fast path (bf16 MXU operands, f32 accumulation) — loose tolerance.
    out_bf16 = jax.block_until_ready(
        resblock(x, w1, b1, w2, b2, alpha, matmul_dtype=jnp.bfloat16))
    assert out_bf16.shape == (batch, width)
    assert jnp.allclose(out_bf16, ref, atol=1e-1, rtol=1e-1), (
        float(jnp.max(jnp.abs(out_bf16 - ref))))

    print("KERNEL_OK")
</pallas_src>

<mosaic_0001>
module attributes {stable_mosaic.version = 11 : i64} {
  func.func @resblock_kernel(%arg0: i32, %arg1: memref<128x32xf32, #tpu.memory_space<vmem>>, %arg2: memref<32x16xf32, #tpu.memory_space<vmem>>, %arg3: memref<1x16xf32, #tpu.memory_space<vmem>>, %arg4: memref<16x32xf32, #tpu.memory_space<vmem>>, %arg5: memref<1x32xf32, #tpu.memory_space<vmem>>, %arg6: memref<1xf32, #tpu.memory_space<smem>>, %arg7: memref<128x32xf32, #tpu.memory_space<vmem>>) attributes {dimension_semantics = [#tpu.dimension_semantics<parallel>], iteration_bounds = array<i64: 3>, scalar_prefetch = 0 : i64, scratch_operands = 0 : i64, tpu.core_type = #tpu.core_type<tc>, window_params = [{transform_indices = @transform_0, window_bounds = array<i64: 128, 32>}, {pipeline_mode = #tpu.pipeline_mode<synchronous>, transform_indices = @transform_1, window_bounds = array<i64: 32, 16>}, {pipeline_mode = #tpu.pipeline_mode<synchronous>, transform_indices = @transform_2, window_bounds = array<i64: 1, 16>}, {pipeline_mode = #tpu.pipeline_mode<synchronous>, transform_indices = @transform_3, window_bounds = array<i64: 16, 32>}, {pipeline_mode = #tpu.pipeline_mode<synchronous>, transform_indices = @transform_4, window_bounds = array<i64: 1, 32>}, {transform_indices = @transform_5, window_bounds = array<i64: 1>}, {transform_indices = @transform_6, window_bounds = array<i64: 128, 32>}]} {
    %c0 = arith.constant 0 : index
    %c0_0 = arith.constant 0 : index
    %0 = vector.load %arg1[%c0, %c0_0] : memref<128x32xf32, #tpu.memory_space<vmem>>, vector<128x32xf32>
    %1 = arith.negf %0 : vector<128x32xf32>
    %2 = math.exp %1 : vector<128x32xf32>
    %cst = arith.constant 1.000000e+00 : f32
    %3 = vector.broadcast %cst : f32 to vector<128x32xf32>
    %4 = arith.addf %3, %2 : vector<128x32xf32>
    %5 = arith.divf %3, %4 : vector<128x32xf32>
    %6 = arith.mulf %0, %5 : vector<128x32xf32>
    %c0_1 = arith.constant 0 : index
    %c0_2 = arith.constant 0 : index
    %7 = vector.load %arg2[%c0_1, %c0_2] : memref<32x16xf32, #tpu.memory_space<vmem>>, vector<32x16xf32>
    %cst_3 = arith.constant dense<0.000000e+00> : vector<128x16xf32>
    %8 = tpu.matmul %6, %7, %cst_3 {dimension_numbers = #tpu.dot_dimension_numbers<[1], [0], [0], [1], [0, 0, 1, 1], [], []>} : vector<128x32xf32>, vector<32x16xf32>, vector<128x16xf32> -> vector<128x16xf32>
    %c0_4 = arith.constant 0 : index
    %c0_5 = arith.constant 0 : index
    %9 = vector.load %arg3[%c0_4, %c0_5] : memref<1x16xf32, #tpu.memory_space<vmem>>, vector<1x16xf32>
    %10 = vector.broadcast %9 : vector<1x16xf32> to vector<128x16xf32>
    %11 = arith.addf %8, %10 : vector<128x16xf32>
    %12 = arith.negf %11 : vector<128x16xf32>
    %13 = math.exp %12 : vector<128x16xf32>
    %cst_6 = arith.constant 1.000000e+00 : f32
    %14 = vector.broadcast %cst_6 : f32 to vector<128x16xf32>
    %15 = arith.addf %14, %13 : vector<128x16xf32>
    %16 = arith.divf %14, %15 : vector<128x16xf32>
    %17 = arith.mulf %11, %16 : vector<128x16xf32>
    %c0_7 = arith.constant 0 : index
    %c0_8 = arith.constant 0 : index
    %18 = vector.load %arg4[%c0_7, %c0_8] : memref<16x32xf32, #tpu.memory_space<vmem>>, vector<16x32xf32>
    %cst_9 = arith.constant dense<0.000000e+00> : vector<128x32xf32>
    %19 = tpu.matmul %17, %18, %cst_9 {dimension_numbers = #tpu.dot_dimension_numbers<[1], [0], [0], [1], [0, 0, 1, 1], [], []>} : vector<128x16xf32>, vector<16x32xf32>, vector<128x32xf32> -> vector<128x32xf32>
    %c0_10 = arith.constant 0 : index
    %c0_11 = arith.constant 0 : index
    %20 = vector.load %arg5[%c0_10, %c0_11] : memref<1x32xf32, #tpu.memory_space<vmem>>, vector<1x32xf32>
    %21 = vector.broadcast %20 : vector<1x32xf32> to vector<128x32xf32>
    %22 = arith.addf %19, %21 : vector<128x32xf32>
    %c0_12 = arith.constant 0 : index
    %23 = memref.load %arg6[%c0_12] : memref<1xf32, #tpu.memory_space<smem>>
    %c0_13 = arith.constant 0 : index
    %c0_14 = arith.constant 0 : index
    %24 = vector.load %arg1[%c0_13, %c0_14] : memref<128x32xf32, #tpu.memory_space<vmem>>, vector<128x32xf32>
    %25 = vector.broadcast %23 : f32 to vector<128x32xf32>
    %26 = arith.mulf %25, %22 : vector<128x32xf32>
    %27 = arith.addf %24, %26 : vector<128x32xf32>
    %c0_15 = arith.constant 0 : index
    %c0_16 = arith.constant 0 : index
    %28 = vector.load %arg7[%c0_15, %c0_16] : memref<128x32xf32, #tpu.memory_space<vmem>>, vector<128x32xf32>
    tpu.vector_store %arg7[%c0_15, %c0_16], %27 {strides = array<i32>} : memref<128x32xf32, #tpu.memory_space<vmem>>, vector<128x32xf32>,
    return
  }
  func.func @transform_0(%arg0: i32) -> (i32, i32) {
    %c0_i32 = arith.constant 0 : i32
    %c0_i32_0 = arith.constant 0 : i32
    return %arg0, %c0_i32 : i32, i32
  }
  func.func @transform_1(%arg0: i32) -> (i32, i32) {
    %c0_i32 = arith.constant 0 : i32
    %c0_i32_0 = arith.constant 0 : i32
    %c0_i32_1 = arith.constant 0 : i32
    return %c0_i32, %c0_i32_0 : i32, i32
  }
  func.func @transform_2(%arg0: i32) -> (i32, i32) {
    %c0_i32 = arith.constant 0 : i32
    %c0_i32_0 = arith.constant 0 : i32
    %c0_i32_1 = arith.constant 0 : i32
    return %c0_i32, %c0_i32_0 : i32, i32
  }
  func.func @transform_3(%arg0: i32) -> (i32, i32) {
    %c0_i32 = arith.constant 0 : i32
    %c0_i32_0 = arith.constant 0 : i32
    %c0_i32_1 = arith.constant 0 : i32
    return %c0_i32, %c0_i32_0 : i32, i32
  }
  func.func @transform_4(%arg0: i32) -> (i32, i32) {
    %c0_i32 = arith.constant 0 : i32
    %c0_i32_0 = arith.constant 0 : i32
    %c0_i32_1 = arith.constant 0 : i32
    return %c0_i32, %c0_i32_0 : i32, i32
  }
  func.func @transform_5(%arg0: i32) -> i32 {
    %c0_i32 = arith.constant 0 : i32
    %c0_i32_0 = arith.constant 0 : i32
    return %c0_i32 : i32
  }
  func.func @transform_6(%arg0: i32) -> (i32, i32) {
    %c0_i32 = arith.constant 0 : i32
    %c0_i32_0 = arith.constant 0 : i32
    return %arg0, %c0_i32 : i32, i32
  }
}

module attributes {stable_mosaic.version = 11 : i64} {
  func.func @resblock_kernel(%arg0: i32, %arg1: memref<128x32xf32, #tpu.memory_space<vmem>>, %arg2: memref<32x16xf32, #tpu.memory_space<vmem>>, %arg3: memref<1x16xf32, #tpu.memory_space<vmem>>, %arg4: memref<16x32xf32, #tpu.memory_space<vmem>>, %arg5: memref<1x32xf32, #tpu.memory_space<vmem>>, %arg6: memref<1xf32, #tpu.memory_space<smem>>, %arg7: memref<128x32xf32, #tpu.memory_space<vmem>>) attributes {dimension_semantics = [#tpu.dimension_semantics<parallel>], iteration_bounds = array<i64: 3>, scalar_prefetch = 0 : i64, scratch_operands = 0 : i64, tpu.core_type = #tpu.core_type<tc>, window_params = [{transform_indices = @transform_0, window_bounds = array<i64: 128, 32>}, {pipeline_mode = #tpu.pipeline_mode<synchronous>, transform_indices = @transform_1, window_bounds = array<i64: 32, 16>}, {pipeline_mode = #tpu.pipeline_mode<synchronous>, transform_indices = @transform_2, window_bounds = array<i64: 1, 16>}, {pipeline_mode = #tpu.pipeline_mode<synchronous>, transform_indices = @transform_3, window_bounds = array<i64: 16, 32>}, {pipeline_mode = #tpu.pipeline_mode<synchronous>, transform_indices = @transform_4, window_bounds = array<i64: 1, 32>}, {transform_indices = @transform_5, window_bounds = array<i64: 1>}, {transform_indices = @transform_6, window_bounds = array<i64: 128, 32>}]} {
    %c0 = arith.constant 0 : index
    %c0_0 = arith.constant 0 : index
    %0 = vector.load %arg1[%c0, %c0_0] : memref<128x32xf32, #tpu.memory_space<vmem>>, vector<128x32xf32>
    %1 = arith.negf %0 : vector<128x32xf32>
    %2 = math.exp %1 : vector<128x32xf32>
    %cst = arith.constant 1.000000e+00 : f32
    %3 = vector.broadcast %cst : f32 to vector<128x32xf32>
    %4 = arith.addf %3, %2 : vector<128x32xf32>
    %5 = arith.divf %3, %4 : vector<128x32xf32>
    %6 = arith.mulf %0, %5 : vector<128x32xf32>
    %c0_1 = arith.constant 0 : index
    %c0_2 = arith.constant 0 : index
    %7 = vector.load %arg2[%c0_1, %c0_2] : memref<32x16xf32, #tpu.memory_space<vmem>>, vector<32x16xf32>
    %cst_3 = arith.constant dense<0.000000e+00> : vector<128x16xf32>
    %8 = tpu.matmul %6, %7, %cst_3 {dimension_numbers = #tpu.dot_dimension_numbers<[1], [0], [0], [1], [0, 0, 1, 1], [], []>} : vector<128x32xf32>, vector<32x16xf32>, vector<128x16xf32> -> vector<128x16xf32>
    %c0_4 = arith.constant 0 : index
    %c0_5 = arith.constant 0 : index
    %9 = vector.load %arg3[%c0_4, %c0_5] : memref<1x16xf32, #tpu.memory_space<vmem>>, vector<1x16xf32>
    %10 = vector.broadcast %9 : vector<1x16xf32> to vector<128x16xf32>
    %11 = arith.addf %8, %10 : vector<128x16xf32>
    %12 = arith.negf %11 : vector<128x16xf32>
    %13 = math.exp %12 : vector<128x16xf32>
    %cst_6 = arith.constant 1.000000e+00 : f32
    %14 = vector.broadcast %cst_6 : f32 to vector<128x16xf32>
    %15 = arith.addf %14, %13 : vector<128x16xf32>
    %16 = arith.divf %14, %15 : vector<128x16xf32>
    %17 = arith.mulf %11, %16 : vector<128x16xf32>
    %c0_7 = arith.constant 0 : index
    %c0_8 = arith.constant 0 : index
    %18 = vector.load %arg4[%c0_7, %c0_8] : memref<16x32xf32, #tpu.memory_space<vmem>>, vector<16x32xf32>
    %cst_9 = arith.constant dense<0.000000e+00> : vector<128x32xf32>
    %19 = tpu.matmul %17, %18, %cst_9 {dimension_numbers = #tpu.dot_dimension_numbers<[1], [0], [0], [1], [0, 0, 1, 1], [], []>} : vector<128x16xf32>, vector<16x32xf32>, vector<128x32xf32> -> vector<128x32xf32>
    %c0_10 = arith.constant 0 : index
    %c0_11 = arith.constant 0 : index
    %20 = vector.load %arg5[%c0_10, %c0_11] : memref<1x32xf32, #tpu.memory_space<vmem>>, vector<1x32xf32>
    %21 = vector.broadcast %20 : vector<1x32xf32> to vector<128x32xf32>
    %22 = arith.addf %19, %21 : vector<128x32xf32>
    %c0_12 = arith.constant 0 : index
    %23 = memref.load %arg6[%c0_12] : memref<1xf32, #tpu.memory_space<smem>>
    %c0_13 = arith.constant 0 : index
    %c0_14 = arith.constant 0 : index
    %24 = vector.load %arg1[%c0_13, %c0_14] : memref<128x32xf32, #tpu.memory_space<vmem>>, vector<128x32xf32>
    %25 = vector.broadcast %23 : f32 to vector<128x32xf32>
    %26 = arith.mulf %25, %22 : vector<128x32xf32>
    %27 = arith.addf %24, %26 : vector<128x32xf32>
    %c0_15 = arith.constant 0 : index
    %c0_16 = arith.constant 0 : index
    %28 = vector.load %arg7[%c0_15, %c0_16] : memref<128x32xf32, #tpu.memory_space<vmem>>, vector<128x32xf32>
    tpu.vector_store %arg7[%c0_15, %c0_16], %27 {strides = array<i32>} : memref<128x32xf32, #tpu.memory_space<vmem>>, vector<128x32xf32>,
    return
  }
  func.func @transform_0(%arg0: i32) -> (i32, i32) {
    %c0_i32 = arith.constant 0 : i32
    %c0_i32_0 = arith.constant 0 : i32
    return %arg0, %c0_i32 : i32, i32
  }
  func.func @transform_1(%arg0: i32) -> (i32, i32) {
    %c0_i32 = arith.constant 0 : i32
    %c0_i32_0 = arith.constant 0 : i32
    %c0_i32_1 = arith.constant 0 : i32
    return %c0_i32, %c0_i32_0 : i32, i32
  }
  func.func @transform_2(%arg0: i32) -> (i32, i32) {
    %c0_i32 = arith.constant 0 : i32
    %c0_i32_0 = arith.constant 0 : i32
    %c0_i32_1 = arith.constant 0 : i32
    return %c0_i32, %c0_i32_0 : i32, i32
  }
  func.func @transform_3(%arg0: i32) -> (i32, i32) {
    %c0_i32 = arith.constant 0 : i32
    %c0_i32_0 = arith.constant 0 : i32
    %c0_i32_1 = arith.constant 0 : i32
    return %c0_i32, %c0_i32_0 : i32, i32
  }
  func.func @transform_4(%arg0: i32) -> (i32, i32) {
    %c0_i32 = arith.constant 0 : i32
    %c0_i32_0 = arith.constant 0 : i32
    %c0_i32_1 = arith.constant 0 : i32
    return %c0_i32, %c0_i32_0 : i32, i32
  }
  func.func @transform_5(%arg0: i32) -> i32 {
    %c0_i32 = arith.constant 0 : i32
    %c0_i32_0 = arith.constant 0 : i32
    return %c0_i32 : i32
  }
  func.func @transform_6(%arg0: i32) -> (i32, i32) {
    %c0_i32 = arith.constant 0 : i32
    %c0_i32_0 = arith.constant 0 : i32
    return %arg0, %c0_i32 : i32, i32
  }
}

</mosaic_0001>

<llo_original>
// kernel: tpu_custom_call.1
$region0: #{tpu_custom_call.1}
  #allocation0 [shape = 'u32[]', space=smem, size = 0x4, offset = 0x4, fixed_abs, tag = 'smem constant byte address 0x4 - core index']
  #allocation1 [shape = 'u32[144,128]{1,0:T(1,128)}', space=vmem, size = 0x12000, scoped, tag = 'internal scratch']
  #allocation2 [shape = 'f32[1]{0:T(128)S(6)}', space=smem, size = 0x200, scoped, tag = 'scoped memory for tpu_custom_call.1']
  %s0 = inlined_call_operand.vmem [shape: f32[300,32], index: 0, kind: input, shape index: {}]
  %s1 = inlined_call_operand.vmem [shape: f32[32,16], index: 1, kind: input, shape index: {}]
  %s2 = inlined_call_operand.vmem [shape: f32[1,16], index: 2, kind: input, shape index: {}]
  %s3 = inlined_call_operand.vmem [shape: f32[16,32], index: 3, kind: input, shape index: {}]
  %s4 = inlined_call_operand.vmem [shape: f32[1,32], index: 4, kind: input, shape index: {}]
  %s5 = inlined_call_operand.<no memory space> [shape: f32[1], index: 5, kind: input, shape index: {}]
  %s6 = inlined_call_operand.vmem [shape: f32[300,32], index: 6, kind: output, shape index: {}]
  %s7 = sld [smem:[#allocation0]]
  $region105: #{tpu_custom_call.1} parent=0
    _
  %s9 = ssub.s32 1, %s7
  %s10 = scalar_select 0, %s9, %s7
  %11 = sst [smem:[#allocation2]] %s5
  $region1: #{tpu_custom_call.1} parent=0
    #allocation3 [shape = 'u8[131072]{0}', space=vmem, size = 0x20000, scoped, tag = 'output window, operand 0']
    loop: start=0, step=1, limit=5
    $region2: #{tpu_custom_call.1} parent=1 // loop_pre_header
      _
    $region3: #{tpu_custom_call.1} parent=1 // loop_header
      %s13 = sphi 0, %s17
      %p14 = scmp.ge.s32.totalorder %s13, 5
      %s23 = sphi 0, %s25
      %s26 = sphi 0, %s23
      %s27 = sphi 0, %s26
      %s43 = sphi 0, %s27
      %s47 = sphi 0, %s47
      %s49 = sphi 0, %s47
      %s50 = sphi 0, %s49
      %s64 = sphi 0, %s50
      %s68 = sphi 0, %s68
      %s70 = sphi 0, %s68
      %s71 = sphi 0, %s70
      %s85 = sphi 0, %s71
      %s89 = sphi 0, %s89
      %s91 = sphi 0, %s89
      %s92 = sphi 0, %s91
      %s106 = sphi 0, %s92
      %s110 = sphi 0, %s110
      %s112 = sphi 0, %s110
      %s113 = sphi 0, %s112
      %s127 = sphi 0, %s113
      %s131 = sphi 0, %s131
      %s133 = sphi 0, %s131
      %s134 = sphi 0, %s133
      %s148 = sphi 0, %s134
      %s154 = sphi 0, %s156
      %s157 = sphi 0, %s154
      %s158 = sphi 0, %s157
      %s174 = sphi 0, %s158
    $region4: #{tpu_custom_call.1} parent=1 // loop_header_branch
      %16 = sbr.rel (%p14) target = $region8
    $region5: #{tpu_custom_call.1} parent=1 // loop_body
      %s18 = ssub.s32 %s13, 1
      %s19 = ssub.s32 %s13, 2
      %s20 = sadd.s32 %s13, 1
      %s21 = ssub.s32 %s13, %s20
      %p22 = scmp.eq.s32.totalorder %s21, 0
      %s24 = sadd.s32 %s23, 1
      %s25 = scalar_select %p22, %s23, %s24
      %p28 = pneg %p22
      %p29 = scmp.eq.s32.totalorder %s13, 2
      %p30 = por %p28, %p29
      %p31 = scmp.ne.s32.totalorder %s23, %s26
      %p32 = scmp.eq.s32.totalorder %s13, 0
      %p33 = por %p31, %p32
      %p34 = scmp.ne.s32.totalorder %s23, %s26
      %p35 = scmp.eq.s32.totalorder %s18, 2
      %p36 = por %p34, %p35
      %p37 = scmp.ne.s32.totalorder %s26, %s27
      %p38 = scmp.eq.s32.totalorder %s18, 0
      %p39 = por %p37, %p38
      %p40 = scmp.ne.s32.totalorder %s26, %s27
      %p41 = scmp.eq.s32.totalorder %s19, 2
      %p42 = por %p40, %p41
      %p44 = scmp.ne.s32.totalorder %s27, %s43
      %p45 = scmp.eq.s32.totalorder %s19, 0
      %p46 = por %p44, %p45
      %s48 = sadd.s32 %s47, 1
      %p51 = scmp.eq.s32.totalorder %s13, 2
      %p52 = scmp.ne.s32.totalorder %s47, %s49
      %p53 = scmp.eq.s32.totalorder %s13, 0
      %p54 = por %p52, %p53
      %p55 = scmp.ne.s32.totalorder %s47, %s49
      %p56 = scmp.eq.s32.totalorder %s18, 2
      %p57 = por %p55, %p56
      %p58 = scmp.ne.s32.totalorder %s49, %s50
      %p59 = scmp.eq.s32.totalorder %s18, 0
      %p60 = por %p58, %p59
      %p61 = scmp.ne.s32.totalorder %s49, %s50
      %p62 = scmp.eq.s32.totalorder %s19, 2
      %p63 = por %p61, %p62
      %p65 = scmp.ne.s32.totalorder %s50, %s64
      %p66 = scmp.eq.s32.totalorder %s19, 0
      %p67 = por %p65, %p66
      %s69 = sadd.s32 %s68, 1
      %p72 = scmp.eq.s32.totalorder %s13, 2
      %p73 = scmp.ne.s32.totalorder %s68, %s70
      %p74 = scmp.eq.s32.totalorder %s13, 0
      %p75 = por %p73, %p74
      %p76 = scmp.ne.s32.totalorder %s68, %s70
      %p77 = scmp.eq.s32.totalorder %s18, 2
      %p78 = por %p76, %p77
      %p79 = scmp.ne.s32.totalorder %s70, %s71
      %p80 = scmp.eq.s32.totalorder %s18, 0
      %p81 = por %p79, %p80
      %p82 = scmp.ne.s32.totalorder %s70, %s71
      %p83 = scmp.eq.s32.totalorder %s19, 2
      %p84 = por %p82, %p83
      %p86 = scmp.ne.s32.totalorder %s71, %s85
      %p87 = scmp.eq.s32.totalorder %s19, 0
      %p88 = por %p86, %p87
      %s90 = sadd.s32 %s89, 1
      %p93 = scmp.eq.s32.totalorder %s13, 2
      %p94 = scmp.ne.s32.totalorder %s89, %s91
      %p95 = scmp.eq.s32.totalorder %s13, 0
      %p96 = por %p94, %p95
      %p97 = scmp.ne.s32.totalorder %s89, %s91
      %p98 = scmp.eq.s32.totalorder %s18, 2
      %p99 = por %p97, %p98
      %p100 = scmp.ne.s32.totalorder %s91, %s92
      %p101 = scmp.eq.s32.totalorder %s18, 0
      %p102 = por %p100, %p101
      %p103 = scmp.ne.s32.totalorder %s91, %s92
      %p104 = scmp.eq.s32.totalorder %s19, 2
      %p105 = por %p103, %p104
      %p107 = scmp.ne.s32.totalorder %s92, %s106
      %p108 = scmp.eq.s32.totalorder %s19, 0
      %p109 = por %p107, %p108
      %s111 = sadd.s32 %s110, 1
      %p114 = scmp.eq.s32.totalorder %s13, 2
      %p115 = scmp.ne.s32.totalorder %s110, %s112
      %p116 = scmp.eq.s32.totalorder %s13, 0
      %p117 = por %p115, %p116
      %p118 = scmp.ne.s32.totalorder %s110, %s112
      %p119 = scmp.eq.s32.totalorder %s18, 2
      %p120 = por %p118, %p119
      %p121 = scmp.ne.s32.totalorder %s112, %s113
      %p122 = scmp.eq.s32.totalorder %s18, 0
      %p123 = por %p121, %p122
      %p124 = scmp.ne.s32.totalorder %s112, %s113
      %p125 = scmp.eq.s32.totalorder %s19, 2
      %p126 = por %p124, %p125
      %p128 = scmp.ne.s32.totalorder %s113, %s127
      %p129 = scmp.eq.s32.totalorder %s19, 0
      %p130 = por %p128, %p129
      %s132 = sadd.s32 %s131, 1
      %p135 = scmp.eq.s32.totalorder %s13, 2
      %p136 = scmp.ne.s32.totalorder %s131, %s133
      %p137 = scmp.eq.s32.totalorder %s13, 0
      %p138 = por %p136, %p137
      %p139 = scmp.ne.s32.totalorder %s131, %s133
      %p140 = scmp.eq.s32.totalorder %s18, 2
      %p141 = por %p139, %p140
      %p142 = scmp.ne.s32.totalorder %s133, %s134
      %p143 = scmp.eq.s32.totalorder %s18, 0
      %p144 = por %p142, %p143
      %p145 = scmp.ne.s32.totalorder %s133, %s134
      %p146 = scmp.eq.s32.totalorder %s19, 2
      %p147 = por %p145, %p146
      %p149 = scmp.ne.s32.totalorder %s134, %s148
      %p150 = scmp.eq.s32.totalorder %s19, 0
      %p151 = por %p149, %p150
      %s152 = ssub.s32 %s13, %s20
      %p153 = scmp.eq.s32.totalorder %s152, 0
      %s155 = sadd.s32 %s154, 1
      %s156 = scalar_select %p153, %s154, %s155
      %p159 = pneg %p153
      %p160 = scmp.eq.s32.totalorder %s13, 2
      %p161 = por %p159, %p160
      %p162 = scmp.ne.s32.totalorder %s154, %s157
      %p163 = scmp.eq.s32.totalorder %s13, 0
      %p164 = por %p162, %p163
      %p165 = scmp.ne.s32.totalorder %s154, %s157
      %p166 = scmp.eq.s32.totalorder %s18, 2
      %p167 = por %p165, %p166
      %p168 = scmp.ne.s32.totalorder %s157, %s158
      %p169 = scmp.eq.s32.totalorder %s18, 0
      %p170 = por %p168, %p169
      %p171 = scmp.ne.s32.totalorder %s157, %s158
      %p172 = scmp.eq.s32.totalorder %s19, 2
      %p173 = por %p171, %p172
      %p175 = scmp.ne.s32.totalorder %s158, %s174
      %p176 = scmp.eq.s32.totalorder %s19, 0
      %p177 = por %p175, %p176
      %p178 = scmp.le.s32.totalorder 1, %s13
      %p179 = scmp.lt.s32.totalorder %s13, 4
      %p180 = pnand %p178, %p179
      %p181 = pneg %p180
      // Predicated region
      $region9: #{tpu_custom_call.1} parent=5 // pred_check
        _
      $region10: #{tpu_custom_call.1} parent=5 // pred_check_branch
        %183 = sbr.rel (%p180) target = $region12
      $region11: #{tpu_custom_call.1} parent=5 // pred_region
        %s184 = ssub.s32 %s13, 1
        // Predicated region
        $region13: #{tpu_custom_call.1} parent=11 // pred_check
          %p185 = pneg %p60
        $region14: #{tpu_custom_call.1} parent=11 // pred_check_branch
          %187 = sbr.rel (%p185) target = $region16
        $region15: #{tpu_custom_call.1} parent=11 // pred_region
          _
        $region16: #{tpu_custom_call.1} parent=11 // pred_fallthru
          _
        // Predicated region
        $region17: #{tpu_custom_call.1} parent=11 // pred_check
          %p188 = pneg %p81
        $region18: #{tpu_custom_call.1} parent=11 // pred_check_branch
          %190 = sbr.rel (%p188) target = $region20
        $region19: #{tpu_custom_call.1} parent=11 // pred_region
          _
        $region20: #{tpu_custom_call.1} parent=11 // pred_fallthru
          _
        // Predicated region
        $region21: #{tpu_custom_call.1} parent=11 // pred_check
          %p191 = pneg %p102
        $region22: #{tpu_custom_call.1} parent=11 // pred_check_branch
          %193 = sbr.rel (%p191) target = $region24
        $region23: #{tpu_custom_call.1} parent=11 // pred_region
          _
        $region24: #{tpu_custom_call.1} parent=11 // pred_fallthru
          _
        // Predicated region
        $region25: #{tpu_custom_call.1} parent=11 // pred_check
          %p194 = pneg %p123
        $region26: #{tpu_custom_call.1} parent=11 // pred_check_branch
          %196 = sbr.rel (%p194) target = $region28
        $region27: #{tpu_custom_call.1} parent=11 // pred_region
          _
        $region28: #{tpu_custom_call.1} parent=11 // pred_fallthru
          _
        // Predicated region
        $region29: #{tpu_custom_call.1} parent=11 // pred_check
          %p197 = pneg %p144
        $region30: #{tpu_custom_call.1} parent=11 // pred_check_branch
          %199 = sbr.rel (%p197) target = $region32
        $region31: #{tpu_custom_call.1} parent=11 // pred_region
          _
        $region32: #{tpu_custom_call.1} parent=11 // pred_fallthru
          _
      $region12: #{tpu_custom_call.1} parent=5 // pred_fallthru
        _
      %p200 = scmp.lt.s32.totalorder %s13, 3
      // Predicated region
      $region33: #{tpu_custom_call.1} parent=5 // pred_check
        %p201 = pneg %p200
      $region34: #{tpu_custom_call.1} parent=5 // pred_check_branch
        %203 = sbr.rel (%p201) target = $region36
      $region35: #{tpu_custom_call.1} parent=5 // pred_region
        // Predicated region
        $region37: #{tpu_custom_call.1} parent=35 // pred_check
          %p204 = pneg %p33
        $region38: #{tpu_custom_call.1} parent=35 // pred_check_branch
          %206 = sbr.rel (%p204) target = $region40
        $region39: #{tpu_custom_call.1} parent=35 // pred_region
          %s207 = smul.u32 16, %s13
          %s208 = ssub.s32 38, %s207
          %p209 = scmp.lt.s32.totalorder %s208, 16
          %s210 = scalar_select %p209, %s208, 16
          %s211 = smul.u32 128, %s210
          %p212 = scmp.lt.s32.totalorder %s207, 37
          %s213 = scalar_select %p212, %s207, 37
          %s214 = smul.addr %s213, 8
          %s215 = scalar_lea.vmem %s0, %s214
          %s216 = smul.u32 16, %s13
          %s217 = ssub.s32 38, %s216
          %p218 = scmp.lt.s32.totalorder %s217, 16
          %s219 = scalar_select %p218, %s217, 16
          %s220 = smul.u32 128, %s219
        $region40: #{tpu_custom_call.1} parent=35 // pred_fallthru
          _
      $region36: #{tpu_custom_call.1} parent=5 // pred_fallthru
        _
      %p221 = scmp.le.s32.totalorder 1, %s13
      %p222 = scmp.lt.s32.totalorder %s13, 4
      %p223 = pnand %p221, %p222
      %p224 = pneg %p223
      // Predicated region
      $region41: #{tpu_custom_call.1} parent=5 // pred_check
        _
      $region42: #{tpu_custom_call.1} parent=5 // pred_check_branch
        %226 = sbr.rel (%p223) target = $region44
      $region43: #{tpu_custom_call.1} parent=5 // pred_region
        %s227 = ssub.s32 %s13, 1
        %s228 = smul.u32 16, %s18
        %s229 = ssub.s32 38, %s228
        %p230 = scmp.lt.s32.totalorder %s229, 16
        %s231 = scalar_select %p230, %s229, 16
        %s232 = smul.u32 128, %s231
        %p233 = scmp.lt.s32.totalorder %s228, 37
        %s234 = scalar_select %p233, %s228, 37
        %s235 = smul.addr %s234, 8
        %s236 = scalar_lea.vmem %s0, %s235
        %p237 = pneg %p39
        %p238 = pneg %p36
        %p239 = pneg %p60
        %p240 = pneg %p57
        %p241 = pneg %p81
        %p242 = pneg %p78
        %p243 = pneg %p102
        %p244 = pneg %p99
        %p245 = pneg %p123
        %p246 = pneg %p120
        %p247 = pneg %p144
        %p248 = pneg %p141
        %p249 = pneg %p170
        %p250 = pneg %p167
        %s251 = sand.u32 %s157, 1
        %s252 = sand.u32 %s157, 1
        %s253 = smul.addr %s252, 128
        %s254 = scalar_lea.vmem [#allocation3], %s253
        %s255 = smul.u32 16, %s18
        %s256 = ssub.s32 38, %s255
        %p257 = scmp.lt.s32.totalorder %s256, 16
        %s258 = scalar_select %p257, %s256, 16
        %s259 = smul.u32 128, %s258
        %p260 = scmp.lt.s32.totalorder %s255, 37
        %s261 = scalar_select %p260, %s255, 37
        %s262 = smul.addr %s261, 8
        %s263 = scalar_lea.vmem %s0, %s262
        %s264 = smul.u32 16, %s18
        %s265 = ssub.s32 38, %s264
        %p266 = scmp.lt.s32.totalorder %s265, 16
        %s267 = scalar_select %p266, %s265, 16
        %s268 = smul.u32 128, %s267
        %s269 = smul.u32 16, %s18
        %s270 = ssub.s32 38, %s269
        %p271 = scmp.lt.s32.totalorder %s270, 16
        %s272 = scalar_select %p271, %s270, 16
        %s273 = smul.u32 128, %s272
        %v274 = vld [vmem:[%s263] sm:$0xff]
        %v275 = vld [vmem:[%s263 + $0x8] sm:$0xff]
        %v276 = vld [vmem:[%s263 + $0x10] sm:$0xff]
        %v277 = vld [vmem:[%s263 + $0x18] sm:$0xff]
        %v278 = vld [vmem:[%s263 + $0x20] sm:$0xff]
        %v279 = vld [vmem:[%s263 + $0x28] sm:$0xff]
        %v280 = vld [vmem:[%s263 + $0x30] sm:$0xff]
        %v281 = vld [vmem:[%s263 + $0x38] sm:$0xff]
        %v282 = vld [vmem:[%s263 + $0x40] sm:$0xff]
        %v283 = vld [vmem:[%s263 + $0x48] sm:$0xff]
        %v284 = vld [vmem:[%s263 + $0x50] sm:$0xff]
        %v285 = vld [vmem:[%s263 + $0x58] sm:$0xff]
        %v286 = vld [vmem:[%s263 + $0x60] sm:$0xff]
        %v287 = vld [vmem:[%s263 + $0x68] sm:$0xff]
        %v288 = vld [vmem:[%s263 + $0x70] sm:$0xff]
        %v289 = vld [vmem:[%s263 + $0x78] sm:$0xff]
        %v290 = vxor.u32 %v274, 2147483648
        %v291 = vxor.u32 %v275, 2147483648
        %v292 = vxor.u32 %v276, 2147483648
        %v293 = vxor.u32 %v277, 2147483648
        %v294 = vxor.u32 %v278, 2147483648
        %v295 = vxor.u32 %v279, 2147483648
        %v296 = vxor.u32 %v280, 2147483648
        %v297 = vxor.u32 %v281, 2147483648
        %v298 = vxor.u32 %v282, 2147483648
        %v299 = vxor.u32 %v283, 2147483648
        %v300 = vxor.u32 %v284, 2147483648
        %v301 = vxor.u32 %v285, 2147483648
        %v302 = vxor.u32 %v286, 2147483648
        %v303 = vxor.u32 %v287, 2147483648
        %v304 = vxor.u32 %v288, 2147483648
        %v305 = vxor.u32 %v289, 2147483648
        %v306 = vmul.f32 %v290, 1.442695
        %v307 = vpow.pop %v306
        %v308 = vmul.f32 %v291, 1.442695
        %v309 = vpow.pop %v308
        %v310 = vmul.f32 %v292, 1.442695
        %v311 = vpow.pop %v310
        %v312 = vmul.f32 %v293, 1.442695
        %v313 = vpow.pop %v312
        %v314 = vmul.f32 %v294, 1.442695
        %v315 = vpow.pop %v314
        %v316 = vmul.f32 %v295, 1.442695
        %v317 = vpow.pop %v316
        %v318 = vmul.f32 %v296, 1.442695
        %v319 = vpow.pop %v318
        %v320 = vmul.f32 %v297, 1.442695
        %v321 = vpow.pop %v320
        %v322 = vmul.f32 %v298, 1.442695
        %v323 = vpow.pop %v322
        %v324 = vmul.f32 %v299, 1.442695
        %v325 = vpow.pop %v324
        %v326 = vmul.f32 %v300, 1.442695
        %v327 = vpow.pop %v326
        %v328 = vmul.f32 %v301, 1.442695
        %v329 = vpow.pop %v328
        %v330 = vmul.f32 %v302, 1.442695
        %v331 = vpow.pop %v330
        %v332 = vmul.f32 %v303, 1.442695
        %v333 = vpow.pop %v332
        %v334 = vmul.f32 %v304, 1.442695
        %v335 = vpow.pop %v334
        %v336 = vmul.f32 %v305, 1.442695
        %v337 = vpow.pop %v336
        %v338 = vadd.f32 %v307, 1.0
        %v339 = vadd.f32 %v309, 1.0
        %v340 = vadd.f32 %v311, 1.0
        %v341 = vadd.f32 %v313, 1.0
        %v342 = vadd.f32 %v315, 1.0
        %v343 = vadd.f32 %v317, 1.0
        %v344 = vadd.f32 %v319, 1.0
        %v345 = vadd.f32 %v321, 1.0
        %v346 = vadd.f32 %v323, 1.0
        %v347 = vadd.f32 %v325, 1.0
        %v348 = vadd.f32 %v327, 1.0
        %v349 = vadd.f32 %v329, 1.0
        %v350 = vadd.f32 %v331, 1.0
        %v351 = vadd.f32 %v333, 1.0
        %v352 = vadd.f32 %v335, 1.0
        %v353 = vadd.f32 %v337, 1.0
        %v354 = vrcp.pop %v338
        %v355 = vmul.f32 1.0, %v354
        %v356 = vrcp.pop %v339
        %v357 = vmul.f32 1.0, %v356
        %v358 = vrcp.pop %v340
        %v359 = vmul.f32 1.0, %v358
        %v360 = vrcp.pop %v341
        %v361 = vmul.f32 1.0, %v360
        %v362 = vrcp.pop %v342
        %v363 = vmul.f32 1.0, %v362
        %v364 = vrcp.pop %v343
        %v365 = vmul.f32 1.0, %v364
        %v366 = vrcp.pop %v344
        %v367 = vmul.f32 1.0, %v366
        %v368 = vrcp.pop %v345
        %v369 = vmul.f32 1.0, %v368
        %v370 = vrcp.pop %v346
        %v371 = vmul.f32 1.0, %v370
        %v372 = vrcp.pop %v347
        %v373 = vmul.f32 1.0, %v372
        %v374 = vrcp.pop %v348
        %v375 = vmul.f32 1.0, %v374
        %v376 = vrcp.pop %v349
        %v377 = vmul.f32 1.0, %v376
        %v378 = vrcp.pop %v350
        %v379 = vmul.f32 1.0, %v378
        %v380 = vrcp.pop %v351
        %v381 = vmul.f32 1.0, %v380
        %v382 = vrcp.pop %v352
        %v383 = vmul.f32 1.0, %v382
        %v384 = vrcp.pop %v353
        %v385 = vmul.f32 1.0, %v384
        %v386 = vmul.f32 %v274, %v355
        %v387 = vmul.f32 %v275, %v357
        %v388 = vmul.f32 %v276, %v359
        %v389 = vmul.f32 %v277, %v361
        %v390 = vmul.f32 %v278, %v363
        %v391 = vmul.f32 %v279, %v365
        %v392 = vmul.f32 %v280, %v367
        %v393 = vmul.f32 %v281, %v369
        %v394 = vmul.f32 %v282, %v371
        %v395 = vmul.f32 %v283, %v373
        %v396 = vmul.f32 %v284, %v375
        %v397 = vmul.f32 %v285, %v377
        %v398 = vmul.f32 %v286, %v379
        %v399 = vmul.f32 %v287, %v381
        %v400 = vmul.f32 %v288, %v383
        %v401 = vmul.f32 %v289, %v385
        %v402 = vld [vmem:[%s1] sm:$0xff]
        %v403 = vld [vmem:[%s1 + $0x8] sm:$0xff]
        %v404 = vld [vmem:[%s1 + $0x10] sm:$0xff]
        %v405 = vld [vmem:[%s1 + $0x18] sm:$0xff]
        %v406 = vld [vmem:[%s2] sm:$0x1]
        %v408 = vlaneseq
        %v409 = vshrl.u32 %v408, 7
        %v410 = vsub.s32 0, %v409
        %v411 = vrot.slane %v406, %v410
        %vm413 = vcmask 261120
        %v415 = vsel %vm413, %v386, 0
        %v418 = vsel %vm413, %v387, 0
        %v421 = vsel %vm413, %v388, 0
        %v424 = vsel %vm413, %v389, 0
        %v427 = vsel %vm413, %v390, 0
        %v430 = vsel %vm413, %v391, 0
        %v433 = vsel %vm413, %v392, 0
        %v436 = vsel %vm413, %v393, 0
        %v439 = vsel %vm413, %v394, 0
        %v442 = vsel %vm413, %v395, 0
        %v445 = vsel %vm413, %v396, 0
        %v448 = vsel %vm413, %v397, 0
        %v451 = vsel %vm413, %v398, 0
        %v454 = vsel %vm413, %v399, 0
        %v457 = vsel %vm413, %v400, 0
        %v460 = vsel %vm413, %v401, 0
        %462 = vmatprep.subr.mxu0 0.0
        %463 = vmatpush1.msra.mxu0 %v402
        %464 = vmatprep.subr.mxu0 0.0
        %465 = vmatpush1.msra.mxu0 %v403
        %466 = vmatprep.subr.mxu0 0.0
        %467 = vmatpush1.msra.mxu0 %v404
        %468 = vmatprep.subr.mxu0 0.0
        %469 = vmatpush1.msra.mxu0 %v405
        %470 = vmatprep.subr.mxu0 0.0
        %471 = vmatpush1.msra.mxu0 0.0
        %472 = vmatprep.subr.mxu0 0.0
        %473 = vmatpush1.msra.mxu0 0.0
        %474 = vmatprep.subr.mxu0 0.0
        %475 = vmatpush1.msra.mxu0 0.0
        %476 = vmatprep.subr.mxu0 0.0
        %477 = vmatpush1.msra.mxu0 0.0
        %478 = vmatprep.subr.mxu0 0.0
        %479 = vmatpush1.msra.mxu0 0.0
        %480 = vmatprep.subr.mxu0 0.0
        %481 = vmatpush1.msra.mxu0 0.0
        %482 = vmatprep.subr.mxu0 0.0
        %483 = vmatpush1.msra.mxu0 0.0
        %484 = vmatprep.subr.mxu0 0.0
        %485 = vmatpush1.msra.mxu0 0.0
        %486 = vmatprep.subr.mxu0 0.0
        %487 = vmatpush1.msra.mxu0 0.0
        %488 = vmatprep.subr.mxu0 0.0
        %489 = vmatpush1.msra.mxu0 0.0
        %490 = vmatprep.subr.mxu0 0.0
        %491 = vmatpush1.msra.mxu0 0.0
        %492 = vmatprep.subr.mxu0 0.0
        %493 = vmatpush1.msra.mxu0 0.0
        %494 = vmatprep.subr.mxu0 0.0
        %495 = vmatpush1.msra.mxu0 0.0
        %496 = vmatprep.subr.mxu0 0.0
        %497 = vmatpush1.msra.mxu0 0.0
        %498 = vmatprep.subr.mxu0 0.0
        %499 = vmatpush1.msra.mxu0 0.0
        %500 = vmatprep.subr.mxu0 0.0
        %501 = vmatpush1.msra.mxu0 0.0
        %502 = vmatprep.subr.mxu0 0.0
        %503 = vmatpush1.msra.mxu0 0.0
        %504 = vmatprep.subr.mxu0 0.0
        %505 = vmatpush1.msra.mxu0 0.0
        %506 = vmatprep.subr.mxu0 0.0
        %507 = vmatpush1.msra.mxu0 0.0
        %508 = vmatprep.subr.mxu0 0.0
        %509 = vmatpush1.msra.mxu0 0.0
        %510 = vmatprep.subr.mxu0 0.0
        %511 = vmatpush1.msra.mxu0 0.0
        %512 = vmatprep.subr.mxu0 0.0
        %513 = vmatpush1.msra.mxu0 0.0
        %514 = vmatprep.subr.mxu0 0.0
        %515 = vmatpush1.msra.mxu0 0.0
        %516 = vmatprep.subr.mxu0 0.0
        %517 = vmatpush1.msra.mxu0 0.0
        %518 = vmatprep.subr.mxu0 0.0
        %519 = vmatpush1.msra.mxu0 0.0
        %520 = vmatprep.subr.mxu0 0.0
        %521 = vmatpush1.msra.mxu0 0.0
        %522 = vmatprep.subr.mxu0 0.0
        %523 = vmatpush1.msra.mxu0 0.0
        %524 = vmatprep.subr.mxu0 0.0
        %525 = vmatpush1.msra.mxu0 0.0
        %526 = vmatprep.mubr.f32.mxu0 0.0
        %527 = vmatmul.mubr.f32.gmra.mrb[0].mxu0 %v415
        %v528 = vpop.f32.mrb[0].mxu0
        %v529 = vadd.f32 %v411, %v528
        %v530 = vpop.f32.mrb[0].mxu0
        %531 = vmatprep.mubr.f32.mxu0 0.0
        %532 = vmatmul.mubr.f32.gmra.mrb[0].mxu0 %v418
        %v533 = vpop.f32.mrb[0].mxu0
        %v534 = vadd.f32 %v411, %v533
        %v535 = vpop.f32.mrb[0].mxu0
        %536 = vmatprep.mubr.f32.mxu0 0.0
        %537 = vmatmul.mubr.f32.gmra.mrb[0].mxu0 %v421
        %v538 = vpop.f32.mrb[0].mxu0
        %v539 = vadd.f32 %v411, %v538
        %v540 = vpop.f32.mrb[0].mxu0
        %541 = vmatprep.mubr.f32.mxu0 0.0
        %542 = vmatmul.mubr.f32.gmra.mrb[0].mxu0 %v424
        %v543 = vpop.f32.mrb[0].mxu0
        %v544 = vadd.f32 %v411, %v543
        %v545 = vpop.f32.mrb[0].mxu0
        %546 = vmatprep.mubr.f32.mxu0 0.0
        %547 = vmatmul.mubr.f32.gmra.mrb[0].mxu0 %v427
        %v548 = vpop.f32.mrb[0].mxu0
        %v549 = vadd.f32 %v411, %v548
        %v550 = vpop.f32.mrb[0].mxu0
        %551 = vmatprep.mubr.f32.mxu0 0.0
        %552 = vmatmul.mubr.f32.gmra.mrb[0].mxu0 %v430
        %v553 = vpop.f32.mrb[0].mxu0
        %v554 = vadd.f32 %v411, %v553
        %v555 = vpop.f32.mrb[0].mxu0
        %556 = vmatprep.mubr.f32.mxu0 0.0
        %557 = vmatmul.mubr.f32.gmra.mrb[0].mxu0 %v433
        %v558 = vpop.f32.mrb[0].mxu0
        %v559 = vadd.f32 %v411, %v558
        %v560 = vpop.f32.mrb[0].mxu0
        %561 = vmatprep.mubr.f32.mxu0 0.0
        %562 = vmatmul.mubr.f32.gmra.mrb[0].mxu0 %v436
        %v563 = vpop.f32.mrb[0].mxu0
        %v564 = vadd.f32 %v411, %v563
        %v565 = vpop.f32.mrb[0].mxu0
        %566 = vmatprep.mubr.f32.mxu0 0.0
        %567 = vmatmul.mubr.f32.gmra.mrb[0].mxu0 %v439
        %v568 = vpop.f32.mrb[0].mxu0
        %v569 = vadd.f32 %v411, %v568
        %v570 = vpop.f32.mrb[0].mxu0
        %571 = vmatprep.mubr.f32.mxu0 0.0
        %572 = vmatmul.mubr.f32.gmra.mrb[0].mxu0 %v442
        %v573 = vpop.f32.mrb[0].mxu0
        %v574 = vadd.f32 %v411, %v573
        %v575 = vpop.f32.mrb[0].mxu0
        %576 = vmatprep.mubr.f32.mxu0 0.0
        %577 = vmatmul.mubr.f32.gmra.mrb[0].mxu0 %v445
        %v578 = vpop.f32.mrb[0].mxu0
        %v579 = vadd.f32 %v411, %v578
        %v580 = vpop.f32.mrb[0].mxu0
        %581 = vmatprep.mubr.f32.mxu0 0.0
        %582 = vmatmul.mubr.f32.gmra.mrb[0].mxu0 %v448
        %v583 = vpop.f32.mrb[0].mxu0
        %v584 = vadd.f32 %v411, %v583
        %v585 = vpop.f32.mrb[0].mxu0
        %586 = vmatprep.mubr.f32.mxu0 0.0
        %587 = vmatmul.mubr.f32.gmra.mrb[0].mxu0 %v451
        %v588 = vpop.f32.mrb[0].mxu0
        %v589 = vadd.f32 %v411, %v588
        %v590 = vpop.f32.mrb[0].mxu0
        %591 = vmatprep.mubr.f32.mxu0 0.0
        %592 = vmatmul.mubr.f32.gmra.mrb[0].mxu0 %v454
        %v593 = vpop.f32.mrb[0].mxu0
        %v594 = vadd.f32 %v411, %v593
        %v595 = vpop.f32.mrb[0].mxu0
        %596 = vmatprep.mubr.f32.mxu0 0.0
        %597 = vmatmul.mubr.f32.gmra.mrb[0].mxu0 %v457
        %v598 = vpop.f32.mrb[0].mxu0
        %v599 = vadd.f32 %v411, %v598
        %v600 = vpop.f32.mrb[0].mxu0
        %601 = vmatprep.mubr.f32.mxu0 0.0
        %602 = vmatmul.mubr.f32.gmra.mrb[0].mxu0 %v460
        %v603 = vpop.f32.mrb[0].mxu0
        %v604 = vadd.f32 %v411, %v603
        %v605 = vpop.f32.mrb[0].mxu0
        %606 = vdwg.mxu0
        %v607 = vxor.u32 %v529, 2147483648
        %v608 = vxor.u32 %v534, 2147483648
        %v609 = vxor.u32 %v539, 2147483648
        %v610 = vxor.u32 %v544, 2147483648
        %v611 = vxor.u32 %v549, 2147483648
        %v612 = vxor.u32 %v554, 2147483648
        %v613 = vxor.u32 %v559, 2147483648
        %v614 = vxor.u32 %v564, 2147483648
        %v615 = vxor.u32 %v569, 2147483648
        %v616 = vxor.u32 %v574, 2147483648
        %v617 = vxor.u32 %v579, 2147483648
        %v618 = vxor.u32 %v584, 2147483648
        %v619 = vxor.u32 %v589, 2147483648
        %v620 = vxor.u32 %v594, 2147483648
        %v621 = vxor.u32 %v599, 2147483648
        %v622 = vxor.u32 %v604, 2147483648
        %v623 = vmul.f32 %v607, 1.442695
        %v624 = vpow.pop %v623
        %v625 = vmul.f32 %v608, 1.442695
        %v626 = vpow.pop %v625
        %v627 = vmul.f32 %v609, 1.442695
        %v628 = vpow.pop %v627
        %v629 = vmul.f32 %v610, 1.442695
        %v630 = vpow.pop %v629
        %v631 = vmul.f32 %v611, 1.442695
        %v632 = vpow.pop %v631
        %v633 = vmul.f32 %v612, 1.442695
        %v634 = vpow.pop %v633
        %v635 = vmul.f32 %v613, 1.442695
        %v636 = vpow.pop %v635
        %v637 = vmul.f32 %v614, 1.442695
        %v638 = vpow.pop %v637
        %v639 = vmul.f32 %v615, 1.442695
        %v640 = vpow.pop %v639
        %v641 = vmul.f32 %v616, 1.442695
        %v642 = vpow.pop %v641
        %v643 = vmul.f32 %v617, 1.442695
        %v644 = vpow.pop %v643
        %v645 = vmul.f32 %v618, 1.442695
        %v646 = vpow.pop %v645
        %v647 = vmul.f32 %v619, 1.442695
        %v648 = vpow.pop %v647
        %v649 = vmul.f32 %v620, 1.442695
        %v650 = vpow.pop %v649
        %v651 = vmul.f32 %v621, 1.442695
        %v652 = vpow.pop %v651
        %v653 = vmul.f32 %v622, 1.442695
        %v654 = vpow.pop %v653
        %v655 = vadd.f32 %v624, 1.0
        %v656 = vadd.f32 %v626, 1.0
        %v657 = vadd.f32 %v628, 1.0
        %v658 = vadd.f32 %v630, 1.0
        %v659 = vadd.f32 %v632, 1.0
        %v660 = vadd.f32 %v634, 1.0
        %v661 = vadd.f32 %v636, 1.0
        %v662 = vadd.f32 %v638, 1.0
        %v663 = vadd.f32 %v640, 1.0
        %v664 = vadd.f32 %v642, 1.0
        %v665 = vadd.f32 %v644, 1.0
        %v666 = vadd.f32 %v646, 1.0
        %v667 = vadd.f32 %v648, 1.0
        %v668 = vadd.f32 %v650, 1.0
        %v669 = vadd.f32 %v652, 1.0
        %v670 = vadd.f32 %v654, 1.0
        %v671 = vrcp.pop %v655
        %v672 = vmul.f32 1.0, %v671
        %v673 = vrcp.pop %v656
        %v674 = vmul.f32 1.0, %v673
        %v675 = vrcp.pop %v657
        %v676 = vmul.f32 1.0, %v675
        %v677 = vrcp.pop %v658
        %v678 = vmul.f32 1.0, %v677
        %v679 = vrcp.pop %v659
        %v680 = vmul.f32 1.0, %v679
        %v681 = vrcp.pop %v660
        %v682 = vmul.f32 1.0, %v681
        %v683 = vrcp.pop %v661
        %v684 = vmul.f32 1.0, %v683
        %v685 = vrcp.pop %v662
        %v686 = vmul.f32 1.0, %v685
        %v687 = vrcp.pop %v663
        %v688 = vmul.f32 1.0, %v687
        %v689 = vrcp.pop %v664
        %v690 = vmul.f32 1.0, %v689
        %v691 = vrcp.pop %v665
        %v692 = vmul.f32 1.0, %v691
        %v693 = vrcp.pop %v666
        %v694 = vmul.f32 1.0, %v693
        %v695 = vrcp.pop %v667
        %v696 = vmul.f32 1.0, %v695
        %v697 = vrcp.pop %v668
        %v698 = vmul.f32 1.0, %v697
        %v699 = vrcp.pop %v669
        %v700 = vmul.f32 1.0, %v699
        %v701 = vrcp.pop %v670
        %v702 = vmul.f32 1.0, %v701
        %v703 = vmul.f32 %v529, %v672
        %v704 = vmul.f32 %v534, %v674
        %v705 = vmul.f32 %v539, %v676
        %v706 = vmul.f32 %v544, %v678
        %v707 = vmul.f32 %v549, %v680
        %v708 = vmul.f32 %v554, %v682
        %v709 = vmul.f32 %v559, %v684
        %v710 = vmul.f32 %v564, %v686
        %v711 = vmul.f32 %v569, %v688
        %v712 = vmul.f32 %v574, %v690
        %v713 = vmul.f32 %v579, %v692
        %v714 = vmul.f32 %v584, %v694
        %v715 = vmul.f32 %v589, %v696
        %v716 = vmul.f32 %v594, %v698
        %v717 = vmul.f32 %v599, %v700
        %v718 = vmul.f32 %v604, %v702
        %v719 = vld [vmem:[%s3] sm:$0xff]
        %v720 = vld [vmem:[%s3 + $0x8] sm:$0xff]
        %v721 = vld [vmem:[%s4] sm:$0x1]
        %v723 = vlaneseq
        %v724 = vshrl.u32 %v723, 7
        %v725 = vsub.s32 0, %v724
        %v726 = vrot.slane %v721, %v725
        %vm728 = vcmask 130048
        %v730 = vsel %vm728, %v703, 0
        %v733 = vsel %vm728, %v704, 0
        %v736 = vsel %vm728, %v705, 0
        %v739 = vsel %vm728, %v706, 0
        %v742 = vsel %vm728, %v707, 0
        %v745 = vsel %vm728, %v708, 0
        %v748 = vsel %vm728, %v709, 0
        %v751 = vsel %vm728, %v710, 0
        %v754 = vsel %vm728, %v711, 0
        %v757 = vsel %vm728, %v712, 0
        %v760 = vsel %vm728, %v713, 0
        %v763 = vsel %vm728, %v714, 0
        %v766 = vsel %vm728, %v715, 0
        %v769 = vsel %vm728, %v716, 0
        %v772 = vsel %vm728, %v717, 0
        %v775 = vsel %vm728, %v718, 0
        %777 = vmatprep.subr.mxu0 0.0
        %778 = vmatpush1.msra.mxu0 %v719
        %779 = vmatprep.subr.mxu0 0.0
        %780 = vmatpush1.msra.mxu0 %v720
        %781 = vmatprep.subr.mxu0 0.0
        %782 = vmatpush1.msra.mxu0 0.0
        %783 = vmatprep.subr.mxu0 0.0
        %784 = vmatpush1.msra.mxu0 0.0
        %785 = vmatprep.subr.mxu0 0.0
        %786 = vmatpush1.msra.mxu0 0.0
        %787 = vmatprep.subr.mxu0 0.0
        %788 = vmatpush1.msra.mxu0 0.0
        %789 = vmatprep.subr.mxu0 0.0
        %790 = vmatpush1.msra.mxu0 0.0
        %791 = vmatprep.subr.mxu0 0.0
        %792 = vmatpush1.msra.mxu0 0.0
        %793 = vmatprep.subr.mxu0 0.0
        %794 = vmatpush1.msra.mxu0 0.0
        %795 = vmatprep.subr.mxu0 0.0
        %796 = vmatpush1.msra.mxu0 0.0
        %797 = vmatprep.subr.mxu0 0.0
        %798 = vmatpush1.msra.mxu0 0.0
        %799 = vmatprep.subr.mxu0 0.0
        %800 = vmatpush1.msra.mxu0 0.0
        %801 = vmatprep.subr.mxu0 0.0
        %802 = vmatpush1.msra.mxu0 0.0
        %803 = vmatprep.subr.mxu0 0.0
        %804 = vmatpush1.msra.mxu0 0.0
        %805 = vmatprep.subr.mxu0 0.0
        %806 = vmatpush1.msra.mxu0 0.0
        %807 = vmatprep.subr.mxu0 0.0
        %808 = vmatpush1.msra.mxu0 0.0
        %809 = vmatprep.subr.mxu0 0.0
        %810 = vmatpush1.msra.mxu0 0.0
        %811 = vmatprep.subr.mxu0 0.0
        %812 = vmatpush1.msra.mxu0 0.0
        %813 = vmatprep.subr.mxu0 0.0
        %814 = vmatpush1.msra.mxu0 0.0
        %815 = vmatprep.subr.mxu0 0.0
        %816 = vmatpush1.msra.mxu0 0.0
        %817 = vmatprep.subr.mxu0 0.0
        %818 = vmatpush1.msra.mxu0 0.0
        %819 = vmatprep.subr.mxu0 0.0
        %820 = vmatpush1.msra.mxu0 0.0
        %821 = vmatprep.subr.mxu0 0.0
        %822 = vmatpush1.msra.mxu0 0.0
        %823 = vmatprep.subr.mxu0 0.0
        %824 = vmatpush1.msra.mxu0 0.0
        %825 = vmatprep.subr.mxu0 0.0
        %826 = vmatpush1.msra.mxu0 0.0
        %827 = vmatprep.subr.mxu0 0.0
        %828 = vmatpush1.msra.mxu0 0.0
        %829 = vmatprep.subr.mxu0 0.0
        %830 = vmatpush1.msra.mxu0 0.0
        %831 = vmatprep.subr.mxu0 0.0
        %832 = vmatpush1.msra.mxu0 0.0
        %833 = vmatprep.subr.mxu0 0.0
        %834 = vmatpush1.msra.mxu0 0.0
        %835 = vmatprep.subr.mxu0 0.0
        %836 = vmatpush1.msra.mxu0 0.0
        %837 = vmatprep.subr.mxu0 0.0
        %838 = vmatpush1.msra.mxu0 0.0
        %839 = vmatprep.subr.mxu0 0.0
        %840 = vmatpush1.msra.mxu0 0.0
        %841 = vmatprep.mubr.f32.mxu0 0.0
        %842 = vmatmul.mubr.f32.gmra.mrb[0].mxu0 %v730
        %v843 = vpop.f32.mrb[0].mxu0
        %v844 = vadd.f32 %v726, %v843
        %v845 = vpop.f32.mrb[0].mxu0
        %846 = vmatprep.mubr.f32.mxu0 0.0
        %847 = vmatmul.mubr.f32.gmra.mrb[0].mxu0 %v733
        %v848 = vpop.f32.mrb[0].mxu0
        %v849 = vadd.f32 %v726, %v848
        %v850 = vpop.f32.mrb[0].mxu0
        %851 = vmatprep.mubr.f32.mxu0 0.0
        %852 = vmatmul.mubr.f32.gmra.mrb[0].mxu0 %v736
        %v853 = vpop.f32.mrb[0].mxu0
        %v854 = vadd.f32 %v726, %v853
        %v855 = vpop.f32.mrb[0].mxu0
        %856 = vmatprep.mubr.f32.mxu0 0.0
        %857 = vmatmul.mubr.f32.gmra.mrb[0].mxu0 %v739
        %v858 = vpop.f32.mrb[0].mxu0
        %v859 = vadd.f32 %v726, %v858
        %v860 = vpop.f32.mrb[0].mxu0
        %861 = vmatprep.mubr.f32.mxu0 0.0
        %862 = vmatmul.mubr.f32.gmra.mrb[0].mxu0 %v742
        %v863 = vpop.f32.mrb[0].mxu0
        %v864 = vadd.f32 %v726, %v863
        %v865 = vpop.f32.mrb[0].mxu0
        %866 = vmatprep.mubr.f32.mxu0 0.0
        %867 = vmatmul.mubr.f32.gmra.mrb[0].mxu0 %v745
        %v868 = vpop.f32.mrb[0].mxu0
        %v869 = vadd.f32 %v726, %v868
        %v870 = vpop.f32.mrb[0].mxu0
        %871 = vmatprep.mubr.f32.mxu0 0.0
        %872 = vmatmul.mubr.f32.gmra.mrb[0].mxu0 %v748
        %v873 = vpop.f32.mrb[0].mxu0
        %v874 = vadd.f32 %v726, %v873
        %v875 = vpop.f32.mrb[0].mxu0
        %876 = vmatprep.mubr.f32.mxu0 0.0
        %877 = vmatmul.mubr.f32.gmra.mrb[0].mxu0 %v751
        %v878 = vpop.f32.mrb[0].mxu0
        %v879 = vadd.f32 %v726, %v878
        %v880 = vpop.f32.mrb[0].mxu0
        %881 = vmatprep.mubr.f32.mxu0 0.0
        %882 = vmatmul.mubr.f32.gmra.mrb[0].mxu0 %v754
        %v883 = vpop.f32.mrb[0].mxu0
        %v884 = vadd.f32 %v726, %v883
        %v885 = vpop.f32.mrb[0].mxu0
        %886 = vmatprep.mubr.f32.mxu0 0.0
        %887 = vmatmul.mubr.f32.gmra.mrb[0].mxu0 %v757
        %v888 = vpop.f32.mrb[0].mxu0
        %v889 = vadd.f32 %v726, %v888
        %v890 = vpop.f32.mrb[0].mxu0
        %891 = vmatprep.mubr.f32.mxu0 0.0
        %892 = vmatmul.mubr.f32.gmra.mrb[0].mxu0 %v760
        %v893 = vpop.f32.mrb[0].mxu0
        %v894 = vadd.f32 %v726, %v893
        %v895 = vpop.f32.mrb[0].mxu0
        %896 = vmatprep.mubr.f32.mxu0 0.0
        %897 = vmatmul.mubr.f32.gmra.mrb[0].mxu0 %v763
        %v898 = vpop.f32.mrb[0].mxu0
        %v899 = vadd.f32 %v726, %v898
        %v900 = vpop.f32.mrb[0].mxu0
        %901 = vmatprep.mubr.f32.mxu0 0.0
        %902 = vmatmul.mubr.f32.gmra.mrb[0].mxu0 %v766
        %v903 = vpop.f32.mrb[0].mxu0
        %v904 = vadd.f32 %v726, %v903
        %v905 = vpop.f32.mrb[0].mxu0
        %906 = vmatprep.mubr.f32.mxu0 0.0
        %907 = vmatmul.mubr.f32.gmra.mrb[0].mxu0 %v769
        %v908 = vpop.f32.mrb[0].mxu0
        %v909 = vadd.f32 %v726, %v908
        %v910 = vpop.f32.mrb[0].mxu0
        %911 = vmatprep.mubr.f32.mxu0 0.0
        %912 = vmatmul.mubr.f32.gmra.mrb[0].mxu0 %v772
        %v913 = vpop.f32.mrb[0].mxu0
        %v914 = vadd.f32 %v726, %v913
        %v915 = vpop.f32.mrb[0].mxu0
        %916 = vmatprep.mubr.f32.mxu0 0.0
        %917 = vmatmul.mubr.f32.gmra.mrb[0].mxu0 %v775
        %v918 = vpop.f32.mrb[0].mxu0
        %v919 = vadd.f32 %v726, %v918
        %v920 = vpop.f32.mrb[0].mxu0
        %921 = vdwg.mxu0
        %s922 = sld [smem:[#allocation2]]
        %v923 = vstv %s922
        %v924 = vmul.f32 %v923, %v844
        %v925 = vmul.f32 %v923, %v849
        %v926 = vmul.f32 %v923, %v854
        %v927 = vmul.f32 %v923, %v859
        %v928 = vmul.f32 %v923, %v864
        %v929 = vmul.f32 %v923, %v869
        %v930 = vmul.f32 %v923, %v874
        %v931 = vmul.f32 %v923, %v879
        %v932 = vmul.f32 %v923, %v884
        %v933 = vmul.f32 %v923, %v889
        %v934 = vmul.f32 %v923, %v894
        %v935 = vmul.f32 %v923, %v899
        %v936 = vmul.f32 %v923, %v904
        %v937 = vmul.f32 %v923, %v909
        %v938 = vmul.f32 %v923, %v914
        %v939 = vmul.f32 %v923, %v919
        %v940 = vadd.f32 %v274, %v924
        %v941 = vadd.f32 %v275, %v925
        %v942 = vadd.f32 %v276, %v926
        %v943 = vadd.f32 %v277, %v927
        %v944 = vadd.f32 %v278, %v928
        %v945 = vadd.f32 %v279, %v929
        %v946 = vadd.f32 %v280, %v930
        %v947 = vadd.f32 %v281, %v931
        %v948 = vadd.f32 %v282, %v932
        %v949 = vadd.f32 %v283, %v933
        %v950 = vadd.f32 %v284, %v934
        %v951 = vadd.f32 %v285, %v935
        %v952 = vadd.f32 %v286, %v936
        %v953 = vadd.f32 %v287, %v937
        %v954 = vadd.f32 %v288, %v938
        %v955 = vadd.f32 %v289, %v939
        %956 = vst.msk [vmem:[%s254] sm:$0xff] %vm413, %v940
        %957 = vst.msk [vmem:[%s254 + $0x8] sm:$0xff] %vm413, %v941
        %958 = vst.msk [vmem:[%s254 + $0x10] sm:$0xff] %vm413, %v942
        %959 = vst.msk [vmem:[%s254 + $0x18] sm:$0xff] %vm413, %v943
        %960 = vst.msk [vmem:[%s254 + $0x20] sm:$0xff] %vm413, %v944
        %961 = vst.msk [vmem:[%s254 + $0x28] sm:$0xff] %vm413, %v945
        %962 = vst.msk [vmem:[%s254 + $0x30] sm:$0xff] %vm413, %v946
        %963 = vst.msk [vmem:[%s254 + $0x38] sm:$0xff] %vm413, %v947
        %964 = vst.msk [vmem:[%s254 + $0x40] sm:$0xff] %vm413, %v948
        %965 = vst.msk [vmem:[%s254 + $0x48] sm:$0xff] %vm413, %v949
        %966 = vst.msk [vmem:[%s254 + $0x50] sm:$0xff] %vm413, %v950
        %967 = vst.msk [vmem:[%s254 + $0x58] sm:$0xff] %vm413, %v951
        %968 = vst.msk [vmem:[%s254 + $0x60] sm:$0xff] %vm413, %v952
        %969 = vst.msk [vmem:[%s254 + $0x68] sm:$0xff] %vm413, %v953
        %970 = vst.msk [vmem:[%s254 + $0x70] sm:$0xff] %vm413, %v954
        %971 = vst.msk [vmem:[%s254 + $0x78] sm:$0xff] %vm413, %v955
        %s972 = sand.u32 %s157, 1
        %s973 = sand.u32 %s157, 1
        %s974 = smul.addr %s973, 128
        %s975 = scalar_lea.vmem [#allocation3], %s974
        // Predicated region
        $region45: #{tpu_custom_call.1} parent=43 // pred_check
          %p976 = pneg %p167
        $region46: #{tpu_custom_call.1} parent=43 // pred_check_branch
          %978 = sbr.rel (%p976) target = $region48
        $region47: #{tpu_custom_call.1} parent=43 // pred_region
          %s979 = smul.u32 16, %s18
          %s980 = ssub.s32 38, %s979
          %p981 = scmp.lt.s32.totalorder %s980, 16
          %s982 = scalar_select %p981, %s980, 16
          %s983 = smul.u32 128, %s982
          %p984 = scmp.ne.s32.totalorder 0, %s983
          %s985 = smul.addr %s979, 8
          %s986 = scalar_lea.vmem %s6, %s985
          // Predicated region
          $region49: #{tpu_custom_call.1} parent=47 // pred_check
            %p987 = pneg %p984
          $region50: #{tpu_custom_call.1} parent=47 // pred_check_branch
            %989 = sbr.rel (%p987) target = $region52
          $region51: #{tpu_custom_call.1} parent=47 // pred_region
            // Predicated region
            $region53: #{tpu_custom_call.1} parent=51 // pred_check
              _
            $region54: #{tpu_custom_call.1} parent=51 // pred_check_branch
              %991 = sbr.rel (0) target = $region56
            $region55: #{tpu_custom_call.1} parent=51 // pred_region
              // Predicated region
              $region75: #{tpu_custom_call.1} parent=55 // pred_check
                _
              $region76: #{tpu_custom_call.1} parent=55 // pred_check_branch
                %1070 = sbr.rel (0) target = $region78
              $region77: #{tpu_custom_call.1} parent=55 // pred_region
                %s1071 = sshrl.u32 %s982, 4
                // While loop
                $region79: #{tpu_custom_call.1} parent=77 // loop_pre_header
                  _
                $region80: #{tpu_custom_call.1} parent=77 // loop_header
                  %s1073 = sphi 0, %s1075
                  %p1074 = scmp.ge.s32.totalorder %s1073, %s1071
                  %s1078 = sphi 0, %s1115
                  %s1079 = sphi %s975, %s1118
                  %s1080 = sphi %s986, %s1119
                $region81: #{tpu_custom_call.1} parent=77 // loop_header_branch
                  %1077 = sbr.rel (%p1074) target = $region85
                $region82: #{tpu_custom_call.1} parent=77 // loop_body
                  %v1081 = vld [vmem:[%s1079] sm:$0xff]
                  %1082 = vst [vmem:[%s1080] sm:$0xff] %v1081
                  %v1083 = vld [vmem:[%s1079 + $0x8] sm:$0xff]
                  %1084 = vst [vmem:[%s1080 + $0x8] sm:$0xff] %v1083
                  %v1085 = vld [vmem:[%s1079 + $0x10] sm:$0xff]
                  %1086 = vst [vmem:[%s1080 + $0x10] sm:$0xff] %v1085
                  %v1087 = vld [vmem:[%s1079 + $0x18] sm:$0xff]
                  %1088 = vst [vmem:[%s1080 + $0x18] sm:$0xff] %v1087
                  %v1089 = vld [vmem:[%s1079 + $0x20] sm:$0xff]
                  %1090 = vst [vmem:[%s1080 + $0x20] sm:$0xff] %v1089
                  %v1091 = vld [vmem:[%s1079 + $0x28] sm:$0xff]
                  %1092 = vst [vmem:[%s1080 + $0x28] sm:$0xff] %v1091
                  %v1093 = vld [vmem:[%s1079 + $0x30] sm:$0xff]
                  %1094 = vst [vmem:[%s1080 + $0x30] sm:$0xff] %v1093
                  %v1095 = vld [vmem:[%s1079 + $0x38] sm:$0xff]
                  %1096 = vst [vmem:[%s1080 + $0x38] sm:$0xff] %v1095
                  %v1097 = vld [vmem:[%s1079 + $0x40] sm:$0xff]
                  %1098 = vst [vmem:[%s1080 + $0x40] sm:$0xff] %v1097
                  %v1099 = vld [vmem:[%s1079 + $0x48] sm:$0xff]
                  %1100 = vst [vmem:[%s1080 + $0x48] sm:$0xff] %v1099
                  %v1101 = vld [vmem:[%s1079 + $0x50] sm:$0xff]
                  %1102 = vst [vmem:[%s1080 + $0x50] sm:$0xff] %v1101
                  %v1103 = vld [vmem:[%s1079 + $0x58] sm:$0xff]
                  %1104 = vst [vmem:[%s1080 + $0x58] sm:$0xff] %v1103
                  %v1105 = vld [vmem:[%s1079 + $0x60] sm:$0xff]
                  %1106 = vst [vmem:[%s1080 + $0x60] sm:$0xff] %v1105
                  %v1107 = vld [vmem:[%s1079 + $0x68] sm:$0xff]
                  %1108 = vst [vmem:[%s1080 + $0x68] sm:$0xff] %v1107
                  %v1109 = vld [vmem:[%s1079 + $0x70] sm:$0xff]
                  %1110 = vst [vmem:[%s1080 + $0x70] sm:$0xff] %v1109
                  %v1111 = vld [vmem:[%s1079 + $0x78] sm:$0xff]
                  %1112 = vst [vmem:[%s1080 + $0x78] sm:$0xff] %v1111
                  %s1113 = sadd.s32 1, %s1078
                  %p1114 = scmp.ge.s32.totalorder %s1113, %s1071
                  %s1115 = scalar_select %p1114, 0, %s1113
                  %s1116 = smul.u32 %s1115, 128
                  %s1117 = smul.u32 %s1115, 128
                  %s1118 = scalar_lea.vmem %s975, %s1116 [#allocation3]
                  %s1119 = scalar_lea.vmem %s986, %s1117
                $region83: #{tpu_custom_call.1} parent=77 // loop_footer
                  %s1075 = sadd.s32 %s1073, 1
                $region84: #{tpu_custom_call.1} parent=77 // loop_footer_branch
                  %1072 = sbr.rel target = $region80
                $region85: #{tpu_custom_call.1} parent=77 // loop_exit
                  _
                %s1120 = sshrl.u32 %s982, 4
                %s1121 = sand.u32 %s982, 15
                %s1122 = smul.u32 %s1120, 16
                %s1123 = smul.u32 8, %s1122
                %s1124 = scalar_lea.vmem %s975, %s1123 [#allocation3]
                %s1125 = smul.u32 8, %s1122
                %s1126 = scalar_lea.vmem %s986, %s1125
                // While loop
                $region86: #{tpu_custom_call.1} parent=77 // loop_pre_header
                  _
                $region87: #{tpu_custom_call.1} parent=77 // loop_header
                  %s1128 = sphi 0, %s1130
                  %p1129 = scmp.ge.s32.totalorder %s1128, %s1121
                  %s1133 = sphi 0, %s1140
                  %s1134 = sphi %s1124, %s1143
                  %s1135 = sphi %s1126, %s1144
                $region88: #{tpu_custom_call.1} parent=77 // loop_header_branch
                  %1132 = sbr.rel (%p1129) target = $region92
                $region89: #{tpu_custom_call.1} parent=77 // loop_body
                  %v1136 = vld [vmem:[%s1134] sm:$0xff]
                  %1137 = vst [vmem:[%s1135] sm:$0xff] %v1136
                  %s1138 = sadd.s32 1, %s1133
                  %p1139 = scmp.ge.s32.totalorder %s1138, %s1121
                  %s1140 = scalar_select %p1139, 0, %s1138
                  %s1141 = smul.u32 %s1140, 8
                  %s1142 = smul.u32 %s1140, 8
                  %s1143 = scalar_lea.vmem %s1124, %s1141 [#allocation3]
                  %s1144 = scalar_lea.vmem %s1126, %s1142
                $region90: #{tpu_custom_call.1} parent=77 // loop_footer
                  %s1130 = sadd.s32 %s1128, 1
                $region91: #{tpu_custom_call.1} parent=77 // loop_footer_branch
                  %1127 = sbr.rel target = $region87
                $region92: #{tpu_custom_call.1} parent=77 // loop_exit
                  _
              $region78: #{tpu_custom_call.1} parent=55 // pred_fallthru
                _
              // Predicated region
              $region93: #{tpu_custom_call.1} parent=55 // pred_check
                _
              $region94: #{tpu_custom_call.1} parent=55 // pred_check_branch
                %1146 = sbr.rel target = $region96
              $region95: #{tpu_custom_call.1} parent=55 // pred_region
                _
              $region96: #{tpu_custom_call.1} parent=55 // pred_fallthru
                _
            $region56: #{tpu_custom_call.1} parent=51 // pred_fallthru
              _
            // Predicated region
            $region57: #{tpu_custom_call.1} parent=51 // pred_check
              _
            $region58: #{tpu_custom_call.1} parent=51 // pred_check_branch
              %993 = sbr.rel target = $region60
            $region59: #{tpu_custom_call.1} parent=51 // pred_region
              %s995 = sshrl.u32 %s982, 4
              // While loop
              $region61: #{tpu_custom_call.1} parent=59 // loop_pre_header
                _
              $region62: #{tpu_custom_call.1} parent=59 // loop_header
                %s997 = sphi 0, %s999
                %p998 = scmp.ge.s32.totalorder %s997, %s995
                %s1002 = sphi 0, %s1039
                %s1003 = sphi %s975, %s1042
                %s1004 = sphi %s986, %s1043
              $region63: #{tpu_custom_call.1} parent=59 // loop_header_branch
                %1001 = sbr.rel (%p998) target = $region67
              $region64: #{tpu_custom_call.1} parent=59 // loop_body
                %v1005 = vld [vmem:[%s1003] sm:$0xff]
                %1006 = vst [vmem:[%s1004] sm:$0xff] %v1005
                %v1007 = vld [vmem:[%s1003 + $0x8] sm:$0xff]
                %1008 = vst [vmem:[%s1004 + $0x8] sm:$0xff] %v1007
                %v1009 = vld [vmem:[%s1003 + $0x10] sm:$0xff]
                %1010 = vst [vmem:[%s1004 + $0x10] sm:$0xff] %v1009
                %v1011 = vld [vmem:[%s1003 + $0x18] sm:$0xff]
                %1012 = vst [vmem:[%s1004 + $0x18] sm:$0xff] %v1011
                %v1013 = vld [vmem:[%s1003 + $0x20] sm:$0xff]
                %1014 = vst [vmem:[%s1004 + $0x20] sm:$0xff] %v1013
                %v1015 = vld [vmem:[%s1003 + $0x28] sm:$0xff]
                %1016 = vst [vmem:[%s1004 + $0x28] sm:$0xff] %v1015
                %v1017 = vld [vmem:[%s1003 + $0x30] sm:$0xff]
                %1018 = vst [vmem:[%s1004 + $0x30] sm:$0xff] %v1017
                %v1019 = vld [vmem:[%s1003 + $0x38] sm:$0xff]
                %1020 = vst [vmem:[%s1004 + $0x38] sm:$0xff] %v1019
                %v1021 = vld [vmem:[%s1003 + $0x40] sm:$0xff]
                %1022 = vst [vmem:[%s1004 + $0x40] sm:$0xff] %v1021
                %v1023 = vld [vmem:[%s1003 + $0x48] sm:$0xff]
                %1024 = vst [vmem:[%s1004 + $0x48] sm:$0xff] %v1023
                %v1025 = vld [vmem:[%s1003 + $0x50] sm:$0xff]
                %1026 = vst [vmem:[%s1004 + $0x50] sm:$0xff] %v1025
                %v1027 = vld [vmem:[%s1003 + $0x58] sm:$0xff]
                %1028 = vst [vmem:[%s1004 + $0x58] sm:$0xff] %v1027
                %v1029 = vld [vmem:[%s1003 + $0x60] sm:$0xff]
                %1030 = vst [vmem:[%s1004 + $0x60] sm:$0xff] %v1029
                %v1031 = vld [vmem:[%s1003 + $0x68] sm:$0xff]
                %1032 = vst [vmem:[%s1004 + $0x68] sm:$0xff] %v1031
                %v1033 = vld [vmem:[%s1003 + $0x70] sm:$0xff]
                %1034 = vst [vmem:[%s1004 + $0x70] sm:$0xff] %v1033
                %v1035 = vld [vmem:[%s1003 + $0x78] sm:$0xff]
                %1036 = vst [vmem:[%s1004 + $0x78] sm:$0xff] %v1035
                %s1037 = sadd.s32 1, %s1002
                %p1038 = scmp.ge.s32.totalorder %s1037, %s995
                %s1039 = scalar_select %p1038, 0, %s1037
                %s1040 = smul.u32 %s1039, 128
                %s1041 = smul.u32 %s1039, 128
                %s1042 = scalar_lea.vmem %s975, %s1040 [#allocation3]
                %s1043 = scalar_lea.vmem %s986, %s1041
              $region65: #{tpu_custom_call.1} parent=59 // loop_footer
                %s999 = sadd.s32 %s997, 1
              $region66: #{tpu_custom_call.1} parent=59 // loop_footer_branch
                %996 = sbr.rel target = $region62
              $region67: #{tpu_custom_call.1} parent=59 // loop_exit
                _
              %s1044 = sshrl.u32 %s982, 4
              %s1045 = sand.u32 %s982, 15
              %s1046 = smul.u32 %s1044, 16
              %s1047 = smul.u32 8, %s1046
              %s1048 = scalar_lea.vmem %s975, %s1047 [#allocation3]
              %s1049 = smul.u32 8, %s1046
              %s1050 = scalar_lea.vmem %s986, %s1049
              // While loop
              $region68: #{tpu_custom_call.1} parent=59 // loop_pre_header
                _
              $region69: #{tpu_custom_call.1} parent=59 // loop_header
                %s1052 = sphi 0, %s1054
                %p1053 = scmp.ge.s32.totalorder %s1052, %s1045
                %s1057 = sphi 0, %s1064
                %s1058 = sphi %s1048, %s1067
                %s1059 = sphi %s1050, %s1068
              $region70: #{tpu_custom_call.1} parent=59 // loop_header_branch
                %1056 = sbr.rel (%p1053) target = $region74
              $region71: #{tpu_custom_call.1} parent=59 // loop_body
                %v1060 = vld [vmem:[%s1058] sm:$0xff]
                %1061 = vst [vmem:[%s1059] sm:$0xff] %v1060
                %s1062 = sadd.s32 1, %s1057
                %p1063 = scmp.ge.s32.totalorder %s1062, %s1045
                %s1064 = scalar_select %p1063, 0, %s1062
                %s1065 = smul.u32 %s1064, 8
                %s1066 = smul.u32 %s1064, 8
                %s1067 = scalar_lea.vmem %s1048, %s1065 [#allocation3]
                %s1068 = scalar_lea.vmem %s1050, %s1066
              $region72: #{tpu_custom_call.1} parent=59 // loop_footer
                %s1054 = sadd.s32 %s1052, 1
              $region73: #{tpu_custom_call.1} parent=59 // loop_footer_branch
                %1051 = sbr.rel target = $region69
              $region74: #{tpu_custom_call.1} parent=59 // loop_exit
                _
            $region60: #{tpu_custom_call.1} parent=51 // pred_fallthru
              _
          $region52: #{tpu_custom_call.1} parent=47 // pred_fallthru
            _
          %1147 = vnop
        $region48: #{tpu_custom_call.1} parent=43 // pred_fallthru
          _
      $region44: #{tpu_custom_call.1} parent=5 // pred_fallthru
        _
      %p1148 = scmp.le.s32.totalorder 2, %s13
      // Predicated region
      $region97: #{tpu_custom_call.1} parent=5 // pred_check
        %p1149 = pneg %p1148
      $region98: #{tpu_custom_call.1} parent=5 // pred_check_branch
        %1151 = sbr.rel (%p1149) target = $region100
      $region99: #{tpu_custom_call.1} parent=5 // pred_region
        %s1152 = ssub.s32 %s13, 2
        // Predicated region
        $region101: #{tpu_custom_call.1} parent=99 // pred_check
          %p1153 = pneg %p173
        $region102: #{tpu_custom_call.1} parent=99 // pred_check_branch
          %1155 = sbr.rel (%p1153) target = $region104
        $region103: #{tpu_custom_call.1} parent=99 // pred_region
          %s1156 = sand.u32 %s158, 1
          %s1157 = sand.u32 %s158, 1
          %s1158 = smul.addr %s1157, 128
          %s1159 = scalar_lea.vmem [#allocation3], %s1158
        $region104: #{tpu_custom_call.1} parent=99 // pred_fallthru
          _
      $region100: #{tpu_custom_call.1} parent=5 // pred_fallthru
        _
    $region6: #{tpu_custom_call.1} parent=1 // loop_footer
      %s17 = sadd.s32 1, %s13
    $region7: #{tpu_custom_call.1} parent=1 // loop_footer_branch
      %12 = sbr.rel target = $region3
    $region8: #{tpu_custom_call.1} parent=1 // loop_exit
      _

// kernel: tpu_custom_call.1
$region0: #{tpu_custom_call.1}
  #allocation0 [shape = 'u32[]', space=smem, size = 0x4, offset = 0x4, fixed_abs, tag = 'smem constant byte address 0x4 - core index']
  #allocation1 [shape = 'u32[144,128]{1,0:T(1,128)}', space=vmem, size = 0x12000, scoped, tag = 'internal scratch']
  #allocation2 [shape = 'f32[1]{0:T(128)S(6)}', space=smem, size = 0x200, scoped, tag = 'scoped memory for tpu_custom_call.1']
  %s0 = inlined_call_operand.vmem [shape: f32[300,32], index: 0, kind: input, shape index: {}]
  %s1 = inlined_call_operand.vmem [shape: f32[32,16], index: 1, kind: input, shape index: {}]
  %s2 = inlined_call_operand.vmem [shape: f32[1,16], index: 2, kind: input, shape index: {}]
  %s3 = inlined_call_operand.vmem [shape: f32[16,32], index: 3, kind: input, shape index: {}]
  %s4 = inlined_call_operand.vmem [shape: f32[1,32], index: 4, kind: input, shape index: {}]
  %s5 = inlined_call_operand.<no memory space> [shape: f32[1], index: 5, kind: input, shape index: {}]
  %s6 = inlined_call_operand.vmem [shape: f32[300,32], index: 6, kind: output, shape index: {}]
  %s7 = sld [smem:[#allocation0]]
  $region105: #{tpu_custom_call.1} parent=0
    _
  %s9 = ssub.s32 1, %s7
  %s10 = scalar_select 0, %s9, %s7
  %11 = sst [smem:[#allocation2]] %s5
  $region1: #{tpu_custom_call.1} parent=0
    #allocation3 [shape = 'u8[131072]{0}', space=vmem, size = 0x20000, scoped, tag = 'output window, operand 0']
    loop: start=0, step=1, limit=5
    $region2: #{tpu_custom_call.1} parent=1 // loop_pre_header
      _
    $region3: #{tpu_custom_call.1} parent=1 // loop_header
      %s13 = sphi 0, %s17
      %p14 = scmp.ge.s32.totalorder %s13, 5
      %s23 = sphi 0, %s25
      %s26 = sphi 0, %s23
      %s27 = sphi 0, %s26
      %s43 = sphi 0, %s27
      %s47 = sphi 0, %s47
      %s49 = sphi 0, %s47
      %s50 = sphi 0, %s49
      %s64 = sphi 0, %s50
      %s68 = sphi 0, %s68
      %s70 = sphi 0, %s68
      %s71 = sphi 0, %s70
      %s85 = sphi 0, %s71
      %s89 = sphi 0, %s89
      %s91 = sphi 0, %s89
      %s92 = sphi 0, %s91
      %s106 = sphi 0, %s92
      %s110 = sphi 0, %s110
      %s112 = sphi 0, %s110
      %s113 = sphi 0, %s112
      %s127 = sphi 0, %s113
      %s131 = sphi 0, %s131
      %s133 = sphi 0, %s131
      %s134 = sphi 0, %s133
      %s148 = sphi 0, %s134
      %s154 = sphi 0, %s156
      %s157 = sphi 0, %s154
      %s158 = sphi 0, %s157
      %s174 = sphi 0, %s158
    $region4: #{tpu_custom_call.1} parent=1 // loop_header_branch
      %16 = sbr.rel (%p14) target = $region8
    $region5: #{tpu_custom_call.1} parent=1 // loop_body
      %s18 = ssub.s32 %s13, 1
      %s19 = ssub.s32 %s13, 2
      %s20 = sadd.s32 %s13, 1
      %s21 = ssub.s32 %s13, %s20
      %p22 = scmp.eq.s32.totalorder %s21, 0
      %s24 = sadd.s32 %s23, 1
      %s25 = scalar_select %p22, %s23, %s24
      %p28 = pneg %p22
      %p29 = scmp.eq.s32.totalorder %s13, 2
      %p30 = por %p28, %p29
      %p31 = scmp.ne.s32.totalorder %s23, %s26
      %p32 = scmp.eq.s32.totalorder %s13, 0
      %p33 = por %p31, %p32
      %p34 = scmp.ne.s32.totalorder %s23, %s26
      %p35 = scmp.eq.s32.totalorder %s18, 2
      %p36 = por %p34, %p35
      %p37 = scmp.ne.s32.totalorder %s26, %s27
      %p38 = scmp.eq.s32.totalorder %s18, 0
      %p39 = por %p37, %p38
      %p40 = scmp.ne.s32.totalorder %s26, %s27
      %p41 = scmp.eq.s32.totalorder %s19, 2
      %p42 = por %p40, %p41
      %p44 = scmp.ne.s32.totalorder %s27, %s43
      %p45 = scmp.eq.s32.totalorder %s19, 0
      %p46 = por %p44, %p45
      %s48 = sadd.s32 %s47, 1
      %p51 = scmp.eq.s32.totalorder %s13, 2
      %p52 = scmp.ne.s32.totalorder %s47, %s49
      %p53 = scmp.eq.s32.totalorder %s13, 0
      %p54 = por %p52, %p53
      %p55 = scmp.ne.s32.totalorder %s47, %s49
      %p56 = scmp.eq.s32.totalorder %s18, 2
      %p57 = por %p55, %p56
      %p58 = scmp.ne.s32.totalorder %s49, %s50
      %p59 = scmp.eq.s32.totalorder %s18, 0
      %p60 = por %p58, %p59
      %p61 = scmp.ne.s32.totalorder %s49, %s50
      %p62 = scmp.eq.s32.totalorder %s19, 2
      %p63 = por %p61, %p62
      %p65 = scmp.ne.s32.totalorder %s50, %s64
      %p66 = scmp.eq.s32.totalorder %s19, 0
      %p67 = por %p65, %p66
      %s69 = sadd.s32 %s68, 1
      %p72 = scmp.eq.s32.totalorder %s13, 2
      %p73 = scmp.ne.s32.totalorder %s68, %s70
      %p74 = scmp.eq.s32.totalorder %s13, 0
      %p75 = por %p73, %p74
      %p76 = scmp.ne.s32.totalorder %s68, %s70
      %p77 = scmp.eq.s32.totalorder %s18, 2
      %p78 = por %p76, %p77
      %p79 = scmp.ne.s32.totalorder %s70, %s71
      %p80 = scmp.eq.s32.totalorder %s18, 0
      %p81 = por %p79, %p80
      %p82 = scmp.ne.s32.totalorder %s70, %s71
      %p83 = scmp.eq.s32.totalorder %s19, 2
      %p84 = por %p82, %p83
      %p86 = scmp.ne.s32.totalorder %s71, %s85
      %p87 = scmp.eq.s32.totalorder %s19, 0
      %p88 = por %p86, %p87
      %s90 = sadd.s32 %s89, 1
      %p93 = scmp.eq.s32.totalorder %s13, 2
      %p94 = scmp.ne.s32.totalorder %s89, %s91
      %p95 = scmp.eq.s32.totalorder %s13, 0
      %p96 = por %p94, %p95
      %p97 = scmp.ne.s32.totalorder %s89, %s91
      %p98 = scmp.eq.s32.totalorder %s18, 2
      %p99 = por %p97, %p98
      %p100 = scmp.ne.s32.totalorder %s91, %s92
      %p101 = scmp.eq.s32.totalorder %s18, 0
      %p102 = por %p100, %p101
      %p103 = scmp.ne.s32.totalorder %s91, %s92
      %p104 = scmp.eq.s32.totalorder %s19, 2
      %p105 = por %p103, %p104
      %p107 = scmp.ne.s32.totalorder %s92, %s106
      %p108 = scmp.eq.s32.totalorder %s19, 0
      %p109 = por %p107, %p108
      %s111 = sadd.s32 %s110, 1
      %p114 = scmp.eq.s32.totalorder %s13, 2
      %p115 = scmp.ne.s32.totalorder %s110, %s112
      %p116 = scmp.eq.s32.totalorder %s13, 0
      %p117 = por %p115, %p116
      %p118 = scmp.ne.s32.totalorder %s110, %s112
      %p119 = scmp.eq.s32.totalorder %s18, 2
      %p120 = por %p118, %p119
      %p121 = scmp.ne.s32.totalorder %s112, %s113
      %p122 = scmp.eq.s32.totalorder %s18, 0
      %p123 = por %p121, %p122
      %p124 = scmp.ne.s32.totalorder %s112, %s113
      %p125 = scmp.eq.s32.totalorder %s19, 2
      %p126 = por %p124, %p125
      %p128 = scmp.ne.s32.totalorder %s113, %s127
      %p129 = scmp.eq.s32.totalorder %s19, 0
      %p130 = por %p128, %p129
      %s132 = sadd.s32 %s131, 1
      %p135 = scmp.eq.s32.totalorder %s13, 2
      %p136 = scmp.ne.s32.totalorder %s131, %s133
      %p137 = scmp.eq.s32.totalorder %s13, 0
      %p138 = por %p136, %p137
      %p139 = scmp.ne.s32.totalorder %s131, %s133
      %p140 = scmp.eq.s32.totalorder %s18, 2
      %p141 = por %p139, %p140
      %p142 = scmp.ne.s32.totalorder %s133, %s134
      %p143 = scmp.eq.s32.totalorder %s18, 0
      %p144 = por %p142, %p143
      %p145 = scmp.ne.s32.totalorder %s133, %s134
      %p146 = scmp.eq.s32.totalorder %s19, 2
      %p147 = por %p145, %p146
      %p149 = scmp.ne.s32.totalorder %s134, %s148
      %p150 = scmp.eq.s32.totalorder %s19, 0
      %p151 = por %p149, %p150
      %s152 = ssub.s32 %s13, %s20
      %p153 = scmp.eq.s32.totalorder %s152, 0
      %s155 = sadd.s32 %s154, 1
      %s156 = scalar_select %p153, %s154, %s155
      %p159 = pneg %p153
      %p160 = scmp.eq.s32.totalorder %s13, 2
      %p161 = por %p159, %p160
      %p162 = scmp.ne.s32.totalorder %s154, %s157
      %p163 = scmp.eq.s32.totalorder %s13, 0
      %p164 = por %p162, %p163
      %p165 = scmp.ne.s32.totalorder %s154, %s157
      %p166 = scmp.eq.s32.totalorder %s18, 2
      %p167 = por %p165, %p166
      %p168 = scmp.ne.s32.totalorder %s157, %s158
      %p169 = scmp.eq.s32.totalorder %s18, 0
      %p170 = por %p168, %p169
      %p171 = scmp.ne.s32.totalorder %s157, %s158
      %p172 = scmp.eq.s32.totalorder %s19, 2
      %p173 = por %p171, %p172
      %p175 = scmp.ne.s32.totalorder %s158, %s174
      %p176 = scmp.eq.s32.totalorder %s19, 0
      %p177 = por %p175, %p176
      %p178 = scmp.le.s32.totalorder 1, %s13
      %p179 = scmp.lt.s32.totalorder %s13, 4
      %p180 = pnand %p178, %p179
      %p181 = pneg %p180
      // Predicated region
      $region9: #{tpu_custom_call.1} parent=5 // pred_check
        _
      $region10: #{tpu_custom_call.1} parent=5 // pred_check_branch
        %183 = sbr.rel (%p180) target = $region12
      $region11: #{tpu_custom_call.1} parent=5 // pred_region
        %s184 = ssub.s32 %s13, 1
        // Predicated region
        $region13: #{tpu_custom_call.1} parent=11 // pred_check
          %p185 = pneg %p60
        $region14: #{tpu_custom_call.1} parent=11 // pred_check_branch
          %187 = sbr.rel (%p185) target = $region16
        $region15: #{tpu_custom_call.1} parent=11 // pred_region
          _
        $region16: #{tpu_custom_call.1} parent=11 // pred_fallthru
          _
        // Predicated region
        $region17: #{tpu_custom_call.1} parent=11 // pred_check
          %p188 = pneg %p81
        $region18: #{tpu_custom_call.1} parent=11 // pred_check_branch
          %190 = sbr.rel (%p188) target = $region20
        $region19: #{tpu_custom_call.1} parent=11 // pred_region
          _
        $region20: #{tpu_custom_call.1} parent=11 // pred_fallthru
          _
        // Predicated region
        $region21: #{tpu_custom_call.1} parent=11 // pred_check
          %p191 = pneg %p102
        $region22: #{tpu_custom_call.1} parent=11 // pred_check_branch
          %193 = sbr.rel (%p191) target = $region24
        $region23: #{tpu_custom_call.1} parent=11 // pred_region
          _
        $region24: #{tpu_custom_call.1} parent=11 // pred_fallthru
          _
        // Predicated region
        $region25: #{tpu_custom_call.1} parent=11 // pred_check
          %p194 = pneg %p123
        $region26: #{tpu_custom_call.1} parent=11 // pred_check_branch
          %196 = sbr.rel (%p194) target = $region28
        $region27: #{tpu_custom_call.1} parent=11 // pred_region
          _
        $region28: #{tpu_custom_call.1} parent=11 // pred_fallthru
          _
        // Predicated region
        $region29: #{tpu_custom_call.1} parent=11 // pred_check
          %p197 = pneg %p144
        $region30: #{tpu_custom_call.1} parent=11 // pred_check_branch
          %199 = sbr.rel (%p197) target = $region32
        $region31: #{tpu_custom_call.1} parent=11 // pred_region
          _
        $region32: #{tpu_custom_call.1} parent=11 // pred_fallthru
          _
      $region12: #{tpu_custom_call.1} parent=5 // pred_fallthru
        _
      %p200 = scmp.lt.s32.totalorder %s13, 3
      // Predicated region
      $region33: #{tpu_custom_call.1} parent=5 // pred_check
        %p201 = pneg %p200
      $region34: #{tpu_custom_call.1} parent=5 // pred_check_branch
        %203 = sbr.rel (%p201) target = $region36
      $region35: #{tpu_custom_call.1} parent=5 // pred_region
        // Predicated region
        $region37: #{tpu_custom_call.1} parent=35 // pred_check
          %p204 = pneg %p33
        $region38: #{tpu_custom_call.1} parent=35 // pred_check_branch
          %206 = sbr.rel (%p204) target = $region40
        $region39: #{tpu_custom_call.1} parent=35 // pred_region
          %s207 = smul.u32 16, %s13
          %s208 = ssub.s32 38, %s207
          %p209 = scmp.lt.s32.totalorder %s208, 16
          %s210 = scalar_select %p209, %s208, 16
          %s211 = smul.u32 128, %s210
          %p212 = scmp.lt.s32.totalorder %s207, 37
          %s213 = scalar_select %p212, %s207, 37
          %s214 = smul.addr %s213, 8
          %s215 = scalar_lea.vmem %s0, %s214
          %s216 = smul.u32 16, %s13
          %s217 = ssub.s32 38, %s216
          %p218 = scmp.lt.s32.totalorder %s217, 16
          %s219 = scalar_select %p218, %s217, 16
          %s220 = smul.u32 128, %s219
        $region40: #{tpu_custom_call.1} parent=35 // pred_fallthru
          _
      $region36: #{tpu_custom_call.1} parent=5 // pred_fallthru
        _
      %p221 = scmp.le.s32.totalorder 1, %s13
      %p222 = scmp.lt.s32.totalorder %s13, 4
      %p223 = pnand %p221, %p222
      %p224 = pneg %p223
      // Predicated region
      $region41: #{tpu_custom_call.1} parent=5 // pred_check
        _
      $region42: #{tpu_custom_call.1} parent=5 // pred_check_branch
        %226 = sbr.rel (%p223) target = $region44
      $region43: #{tpu_custom_call.1} parent=5 // pred_region
        %s227 = ssub.s32 %s13, 1
        %s228 = smul.u32 16, %s18
        %s229 = ssub.s32 38, %s228
        %p230 = scmp.lt.s32.totalorder %s229, 16
        %s231 = scalar_select %p230, %s229, 16
        %s232 = smul.u32 128, %s231
        %p233 = scmp.lt.s32.totalorder %s228, 37
        %s234 = scalar_select %p233, %s228, 37
        %s235 = smul.addr %s234, 8
        %s236 = scalar_lea.vmem %s0, %s235
        %p237 = pneg %p39
        %p238 = pneg %p36
        %p239 = pneg %p60
        %p240 = pneg %p57
        %p241 = pneg %p81
        %p242 = pneg %p78
        %p243 = pneg %p102
        %p244 = pneg %p99
        %p245 = pneg %p123
        %p246 = pneg %p120
        %p247 = pneg %p144
        %p248 = pneg %p141
        %p249 = pneg %p170
        %p250 = pneg %p167
        %s251 = sand.u32 %s157, 1
        %s252 = sand.u32 %s157, 1
        %s253 = smul.addr %s252, 128
        %s254 = scalar_lea.vmem [#allocation3], %s253
        %s255 = smul.u32 16, %s18
        %s256 = ssub.s32 38, %s255
        %p257 = scmp.lt.s32.totalorder %s256, 16
        %s258 = scalar_select %p257, %s256, 16
        %s259 = smul.u32 128, %s258
        %p260 = scmp.lt.s32.totalorder %s255, 37
        %s261 = scalar_select %p260, %s255, 37
        %s262 = smul.addr %s261, 8
        %s263 = scalar_lea.vmem %s0, %s262
        %s264 = smul.u32 16, %s18
        %s265 = ssub.s32 38, %s264
        %p266 = scmp.lt.s32.totalorder %s265, 16
        %s267 = scalar_select %p266, %s265, 16
        %s268 = smul.u32 128, %s267
        %s269 = smul.u32 16, %s18
        %s270 = ssub.s32 38, %s269
        %p271 = scmp.lt.s32.totalorder %s270, 16
        %s272 = scalar_select %p271, %s270, 16
        %s273 = smul.u32 128, %s272
        %v274 = vld [vmem:[%s263] sm:$0xff]
        %v275 = vld [vmem:[%s263 + $0x8] sm:$0xff]
        %v276 = vld [vmem:[%s263 + $0x10] sm:$0xff]
        %v277 = vld [vmem:[%s263 + $0x18] sm:$0xff]
        %v278 = vld [vmem:[%s263 + $0x20] sm:$0xff]
        %v279 = vld [vmem:[%s263 + $0x28] sm:$0xff]
        %v280 = vld [vmem:[%s263 + $0x30] sm:$0xff]
        %v281 = vld [vmem:[%s263 + $0x38] sm:$0xff]
        %v282 = vld [vmem:[%s263 + $0x40] sm:$0xff]
        %v283 = vld [vmem:[%s263 + $0x48] sm:$0xff]
        %v284 = vld [vmem:[%s263 + $0x50] sm:$0xff]
        %v285 = vld [vmem:[%s263 + $0x58] sm:$0xff]
        %v286 = vld [vmem:[%s263 + $0x60] sm:$0xff]
        %v287 = vld [vmem:[%s263 + $0x68] sm:$0xff]
        %v288 = vld [vmem:[%s263 + $0x70] sm:$0xff]
        %v289 = vld [vmem:[%s263 + $0x78] sm:$0xff]
        %v290 = vxor.u32 %v274, 2147483648
        %v291 = vxor.u32 %v275, 2147483648
        %v292 = vxor.u32 %v276, 2147483648
        %v293 = vxor.u32 %v277, 2147483648
        %v294 = vxor.u32 %v278, 2147483648
        %v295 = vxor.u32 %v279, 2147483648
        %v296 = vxor.u32 %v280, 2147483648
        %v297 = vxor.u32 %v281, 2147483648
        %v298 = vxor.u32 %v282, 2147483648
        %v299 = vxor.u32 %v283, 2147483648
        %v300 = vxor.u32 %v284, 2147483648
        %v301 = vxor.u32 %v285, 2147483648
        %v302 = vxor.u32 %v286, 2147483648
        %v303 = vxor.u32 %v287, 2147483648
        %v304 = vxor.u32 %v288, 2147483648
        %v305 = vxor.u32 %v289, 2147483648
        %v306 = vmul.f32 %v290, 1.442695
        %v307 = vpow.pop %v306
        %v308 = vmul.f32 %v291, 1.442695
        %v309 = vpow.pop %v308
        %v310 = vmul.f32 %v292, 1.442695
        %v311 = vpow.pop %v310
        %v312 = vmul.f32 %v293, 1.442695
        %v313 = vpow.pop %v312
        %v314 = vmul.f32 %v294, 1.442695
        %v315 = vpow.pop %v314
        %v316 = vmul.f32 %v295, 1.442695
        %v317 = vpow.pop %v316
        %v318 = vmul.f32 %v296, 1.442695
        %v319 = vpow.pop %v318
        %v320 = vmul.f32 %v297, 1.442695
        %v321 = vpow.pop %v320
        %v322 = vmul.f32 %v298, 1.442695
        %v323 = vpow.pop %v322
        %v324 = vmul.f32 %v299, 1.442695
        %v325 = vpow.pop %v324
        %v326 = vmul.f32 %v300, 1.442695
        %v327 = vpow.pop %v326
        %v328 = vmul.f32 %v301, 1.442695
        %v329 = vpow.pop %v328
        %v330 = vmul.f32 %v302, 1.442695
        %v331 = vpow.pop %v330
        %v332 = vmul.f32 %v303, 1.442695
        %v333 = vpow.pop %v332
        %v334 = vmul.f32 %v304, 1.442695
        %v335 = vpow.pop %v334
        %v336 = vmul.f32 %v305, 1.442695
        %v337 = vpow.pop %v336
        %v338 = vadd.f32 %v307, 1.0
        %v339 = vadd.f32 %v309, 1.0
        %v340 = vadd.f32 %v311, 1.0
        %v341 = vadd.f32 %v313, 1.0
        %v342 = vadd.f32 %v315, 1.0
        %v343 = vadd.f32 %v317, 1.0
        %v344 = vadd.f32 %v319, 1.0
        %v345 = vadd.f32 %v321, 1.0
        %v346 = vadd.f32 %v323, 1.0
        %v347 = vadd.f32 %v325, 1.0
        %v348 = vadd.f32 %v327, 1.0
        %v349 = vadd.f32 %v329, 1.0
        %v350 = vadd.f32 %v331, 1.0
        %v351 = vadd.f32 %v333, 1.0
        %v352 = vadd.f32 %v335, 1.0
        %v353 = vadd.f32 %v337, 1.0
        %v354 = vrcp.pop %v338
        %v355 = vmul.f32 1.0, %v354
        %v356 = vrcp.pop %v339
        %v357 = vmul.f32 1.0, %v356
        %v358 = vrcp.pop %v340
        %v359 = vmul.f32 1.0, %v358
        %v360 = vrcp.pop %v341
        %v361 = vmul.f32 1.0, %v360
        %v362 = vrcp.pop %v342
        %v363 = vmul.f32 1.0, %v362
        %v364 = vrcp.pop %v343
        %v365 = vmul.f32 1.0, %v364
        %v366 = vrcp.pop %v344
        %v367 = vmul.f32 1.0, %v366
        %v368 = vrcp.pop %v345
        %v369 = vmul.f32 1.0, %v368
        %v370 = vrcp.pop %v346
        %v371 = vmul.f32 1.0, %v370
        %v372 = vrcp.pop %v347
        %v373 = vmul.f32 1.0, %v372
        %v374 = vrcp.pop %v348
        %v375 = vmul.f32 1.0, %v374
        %v376 = vrcp.pop %v349
        %v377 = vmul.f32 1.0, %v376
        %v378 = vrcp.pop %v350
        %v379 = vmul.f32 1.0, %v378
        %v380 = vrcp.pop %v351
        %v381 = vmul.f32 1.0, %v380
        %v382 = vrcp.pop %v352
        %v383 = vmul.f32 1.0, %v382
        %v384 = vrcp.pop %v353
        %v385 = vmul.f32 1.0, %v384
        %v386 = vmul.f32 %v274, %v355
        %v387 = vmul.f32 %v275, %v357
        %v388 = vmul.f32 %v276, %v359
        %v389 = vmul.f32 %v277, %v361
        %v390 = vmul.f32 %v278, %v363
        %v391 = vmul.f32 %v279, %v365
        %v392 = vmul.f32 %v280, %v367
        %v393 = vmul.f32 %v281, %v369
        %v394 = vmul.f32 %v282, %v371
        %v395 = vmul.f32 %v283, %v373
        %v396 = vmul.f32 %v284, %v375
        %v397 = vmul.f32 %v285, %v377
        %v398 = vmul.f32 %v286, %v379
        %v399 = vmul.f32 %v287, %v381
        %v400 = vmul.f32 %v288, %v383
        %v401 = vmul.f32 %v289, %v385
        %v402 = vld [vmem:[%s1] sm:$0xff]
        %v403 = vld [vmem:[%s1 + $0x8] sm:$0xff]
        %v404 = vld [vmem:[%s1 + $0x10] sm:$0xff]
        %v405 = vld [vmem:[%s1 + $0x18] sm:$0xff]
        %v406 = vld [vmem:[%s2] sm:$0x1]
        %v408 = vlaneseq
        %v409 = vshrl.u32 %v408, 7
        %v410 = vsub.s32 0, %v409
        %v411 = vrot.slane %v406, %v410
        %vm413 = vcmask 261120
        %v415 = vsel %vm413, %v386, 0
        %v418 = vsel %vm413, %v387, 0
        %v421 = vsel %vm413, %v388, 0
        %v424 = vsel %vm413, %v389, 0
        %v427 = vsel %vm413, %v390, 0
        %v430 = vsel %vm413, %v391, 0
        %v433 = vsel %vm413, %v392, 0
        %v436 = vsel %vm413, %v393, 0
        %v439 = vsel %vm413, %v394, 0
        %v442 = vsel %vm413, %v395, 0
        %v445 = vsel %vm413, %v396, 0
        %v448 = vsel %vm413, %v397, 0
        %v451 = vsel %vm413, %v398, 0
        %v454 = vsel %vm413, %v399, 0
        %v457 = vsel %vm413, %v400, 0
        %v460 = vsel %vm413, %v401, 0
        %462 = vmatprep.subr.mxu0 0.0
        %463 = vmatpush1.msra.mxu0 %v402
        %464 = vmatprep.subr.mxu0 0.0
        %465 = vmatpush1.msra.mxu0 %v403
        %466 = vmatprep.subr.mxu0 0.0
        %467 = vmatpush1.msra.mxu0 %v404
        %468 = vmatprep.subr.mxu0 0.0
        %469 = vmatpush1.msra.mxu0 %v405
        %470 = vmatprep.subr.mxu0 0.0
        %471 = vmatpush1.msra.mxu0 0.0
        %472 = vmatprep.subr.mxu0 0.0
        %473 = vmatpush1.msra.mxu0 0.0
        %474 = vmatprep.subr.mxu0 0.0
        %475 = vmatpush1.msra.mxu0 0.0
        %476 = vmatprep.subr.mxu0 0.0
        %477 = vmatpush1.msra.mxu0 0.0
        %478 = vmatprep.subr.mxu0 0.0
        %479 = vmatpush1.msra.mxu0 0.0
        %480 = vmatprep.subr.mxu0 0.0
        %481 = vmatpush1.msra.mxu0 0.0
        %482 = vmatprep.subr.mxu0 0.0
        %483 = vmatpush1.msra.mxu0 0.0
        %484 = vmatprep.subr.mxu0 0.0
        %485 = vmatpush1.msra.mxu0 0.0
        %486 = vmatprep.subr.mxu0 0.0
        %487 = vmatpush1.msra.mxu0 0.0
        %488 = vmatprep.subr.mxu0 0.0
        %489 = vmatpush1.msra.mxu0 0.0
        %490 = vmatprep.subr.mxu0 0.0
        %491 = vmatpush1.msra.mxu0 0.0
        %492 = vmatprep.subr.mxu0 0.0
        %493 = vmatpush1.msra.mxu0 0.0
        %494 = vmatprep.subr.mxu0 0.0
        %495 = vmatpush1.msra.mxu0 0.0
        %496 = vmatprep.subr.mxu0 0.0
        %497 = vmatpush1.msra.mxu0 0.0
        %498 = vmatprep.subr.mxu0 0.0
        %499 = vmatpush1.msra.mxu0 0.0
        %500 = vmatprep.subr.mxu0 0.0
        %501 = vmatpush1.msra.mxu0 0.0
        %502 = vmatprep.subr.mxu0 0.0
        %503 = vmatpush1.msra.mxu0 0.0
        %504 = vmatprep.subr.mxu0 0.0
        %505 = vmatpush1.msra.mxu0 0.0
        %506 = vmatprep.subr.mxu0 0.0
        %507 = vmatpush1.msra.mxu0 0.0
        %508 = vmatprep.subr.mxu0 0.0
        %509 = vmatpush1.msra.mxu0 0.0
        %510 = vmatprep.subr.mxu0 0.0
        %511 = vmatpush1.msra.mxu0 0.0
        %512 = vmatprep.subr.mxu0 0.0
        %513 = vmatpush1.msra.mxu0 0.0
        %514 = vmatprep.subr.mxu0 0.0
        %515 = vmatpush1.msra.mxu0 0.0
        %516 = vmatprep.subr.mxu0 0.0
        %517 = vmatpush1.msra.mxu0 0.0
        %518 = vmatprep.subr.mxu0 0.0
        %519 = vmatpush1.msra.mxu0 0.0
        %520 = vmatprep.subr.mxu0 0.0
        %521 = vmatpush1.msra.mxu0 0.0
        %522 = vmatprep.subr.mxu0 0.0
        %523 = vmatpush1.msra.mxu0 0.0
        %524 = vmatprep.subr.mxu0 0.0
        %525 = vmatpush1.msra.mxu0 0.0
        %526 = vmatprep.mubr.f32.mxu0 0.0
        %527 = vmatmul.mubr.f32.gmra.mrb[0].mxu0 %v415
        %v528 = vpop.f32.mrb[0].mxu0
        %v529 = vadd.f32 %v411, %v528
        %v530 = vpop.f32.mrb[0].mxu0
        %531 = vmatprep.mubr.f32.mxu0 0.0
        %532 = vmatmul.mubr.f32.gmra.mrb[0].mxu0 %v418
        %v533 = vpop.f32.mrb[0].mxu0
        %v534 = vadd.f32 %v411, %v533
        %v535 = vpop.f32.mrb[0].mxu0
        %536 = vmatprep.mubr.f32.mxu0 0.0
        %537 = vmatmul.mubr.f32.gmra.mrb[0].mxu0 %v421
        %v538 = vpop.f32.mrb[0].mxu0
        %v539 = vadd.f32 %v411, %v538
        %v540 = vpop.f32.mrb[0].mxu0
        %541 = vmatprep.mubr.f32.mxu0 0.0
        %542 = vmatmul.mubr.f32.gmra.mrb[0].mxu0 %v424
        %v543 = vpop.f32.mrb[0].mxu0
        %v544 = vadd.f32 %v411, %v543
        %v545 = vpop.f32.mrb[0].mxu0
        %546 = vmatprep.mubr.f32.mxu0 0.0
        %547 = vmatmul.mubr.f32.gmra.mrb[0].mxu0 %v427
        %v548 = vpop.f32.mrb[0].mxu0
        %v549 = vadd.f32 %v411, %v548
        %v550 = vpop.f32.mrb[0].mxu0
        %551 = vmatprep.mubr.f32.mxu0 0.0
        %552 = vmatmul.mubr.f32.gmra.mrb[0].mxu0 %v430
        %v553 = vpop.f32.mrb[0].mxu0
        %v554 = vadd.f32 %v411, %v553
        %v555 = vpop.f32.mrb[0].mxu0
        %556 = vmatprep.mubr.f32.mxu0 0.0
        %557 = vmatmul.mubr.f32.gmra.mrb[0].mxu0 %v433
        %v558 = vpop.f32.mrb[0].mxu0
        %v559 = vadd.f32 %v411, %v558
        %v560 = vpop.f32.mrb[0].mxu0
        %561 = vmatprep.mubr.f32.mxu0 0.0
        %562 = vmatmul.mubr.f32.gmra.mrb[0].mxu0 %v436
        %v563 = vpop.f32.mrb[0].mxu0
        %v564 = vadd.f32 %v411, %v563
        %v565 = vpop.f32.mrb[0].mxu0
        %566 = vmatprep.mubr.f32.mxu0 0.0
        %567 = vmatmul.mubr.f32.gmra.mrb[0].mxu0 %v439
        %v568 = vpop.f32.mrb[0].mxu0
        %v569 = vadd.f32 %v411, %v568
        %v570 = vpop.f32.mrb[0].mxu0
        %571 = vmatprep.mubr.f32.mxu0 0.0
        %572 = vmatmul.mubr.f32.gmra.mrb[0].mxu0 %v442
        %v573 = vpop.f32.mrb[0].mxu0
        %v574 = vadd.f32 %v411, %v573
        %v575 = vpop.f32.mrb[0].mxu0
        %576 = vmatprep.mubr.f32.mxu0 0.0
        %577 = vmatmul.mubr.f32.gmra.mrb[0].mxu0 %v445
        %v578 = vpop.f32.mrb[0].mxu0
        %v579 = vadd.f32 %v411, %v578
        %v580 = vpop.f32.mrb[0].mxu0
        %581 = vmatprep.mubr.f32.mxu0 0.0
        %582 = vmatmul.mubr.f32.gmra.mrb[0].mxu0 %v448
        %v583 = vpop.f32.mrb[0].mxu0
        %v584 = vadd.f32 %v411, %v583
        %v585 = vpop.f32.mrb[0].mxu0
        %586 = vmatprep.mubr.f32.mxu0 0.0
        %587 = vmatmul.mubr.f32.gmra.mrb[0].mxu0 %v451
        %v588 = vpop.f32.mrb[0].mxu0
        %v589 = vadd.f32 %v411, %v588
        %v590 = vpop.f32.mrb[0].mxu0
        %591 = vmatprep.mubr.f32.mxu0 0.0
        %592 = vmatmul.mubr.f32.gmra.mrb[0].mxu0 %v454
        %v593 = vpop.f32.mrb[0].mxu0
        %v594 = vadd.f32 %v411, %v593
        %v595 = vpop.f32.mrb[0].mxu0
        %596 = vmatprep.mubr.f32.mxu0 0.0
        %597 = vmatmul.mubr.f32.gmra.mrb[0].mxu0 %v457
        %v598 = vpop.f32.mrb[0].mxu0
        %v599 = vadd.f32 %v411, %v598
        %v600 = vpop.f32.mrb[0].mxu0
        %601 = vmatprep.mubr.f32.mxu0 0.0
        %602 = vmatmul.mubr.f32.gmra.mrb[0].mxu0 %v460
        %v603 = vpop.f32.mrb[0].mxu0
        %v604 = vadd.f32 %v411, %v603
        %v605 = vpop.f32.mrb[0].mxu0
        %606 = vdwg.mxu0
        %v607 = vxor.u32 %v529, 2147483648
        %v608 = vxor.u32 %v534, 2147483648
        %v609 = vxor.u32 %v539, 2147483648
        %v610 = vxor.u32 %v544, 2147483648
        %v611 = vxor.u32 %v549, 2147483648
        %v612 = vxor.u32 %v554, 2147483648
        %v613 = vxor.u32 %v559, 2147483648
        %v614 = vxor.u32 %v564, 2147483648
        %v615 = vxor.u32 %v569, 2147483648
        %v616 = vxor.u32 %v574, 2147483648
        %v617 = vxor.u32 %v579, 2147483648
        %v618 = vxor.u32 %v584, 2147483648
        %v619 = vxor.u32 %v589, 2147483648
        %v620 = vxor.u32 %v594, 2147483648
        %v621 = vxor.u32 %v599, 2147483648
        %v622 = vxor.u32 %v604, 2147483648
        %v623 = vmul.f32 %v607, 1.442695
        %v624 = vpow.pop %v623
        %v625 = vmul.f32 %v608, 1.442695
        %v626 = vpow.pop %v625
        %v627 = vmul.f32 %v609, 1.442695
        %v628 = vpow.pop %v627
        %v629 = vmul.f32 %v610, 1.442695
        %v630 = vpow.pop %v629
        %v631 = vmul.f32 %v611, 1.442695
        %v632 = vpow.pop %v631
        %v633 = vmul.f32 %v612, 1.442695
        %v634 = vpow.pop %v633
        %v635 = vmul.f32 %v613, 1.442695
        %v636 = vpow.pop %v635
        %v637 = vmul.f32 %v614, 1.442695
        %v638 = vpow.pop %v637
        %v639 = vmul.f32 %v615, 1.442695
        %v640 = vpow.pop %v639
        %v641 = vmul.f32 %v616, 1.442695
        %v642 = vpow.pop %v641
        %v643 = vmul.f32 %v617, 1.442695
        %v644 = vpow.pop %v643
        %v645 = vmul.f32 %v618, 1.442695
        %v646 = vpow.pop %v645
        %v647 = vmul.f32 %v619, 1.442695
        %v648 = vpow.pop %v647
        %v649 = vmul.f32 %v620, 1.442695
        %v650 = vpow.pop %v649
        %v651 = vmul.f32 %v621, 1.442695
        %v652 = vpow.pop %v651
        %v653 = vmul.f32 %v622, 1.442695
        %v654 = vpow.pop %v653
        %v655 = vadd.f32 %v624, 1.0
        %v656 = vadd.f32 %v626, 1.0
        %v657 = vadd.f32 %v628, 1.0
        %v658 = vadd.f32 %v630, 1.0
        %v659 = vadd.f32 %v632, 1.0
        %v660 = vadd.f32 %v634, 1.0
        %v661 = vadd.f32 %v636, 1.0
        %v662 = vadd.f32 %v638, 1.0
        %v663 = vadd.f32 %v640, 1.0
        %v664 = vadd.f32 %v642, 1.0
        %v665 = vadd.f32 %v644, 1.0
        %v666 = vadd.f32 %v646, 1.0
        %v667 = vadd.f32 %v648, 1.0
        %v668 = vadd.f32 %v650, 1.0
        %v669 = vadd.f32 %v652, 1.0
        %v670 = vadd.f32 %v654, 1.0
        %v671 = vrcp.pop %v655
        %v672 = vmul.f32 1.0, %v671
        %v673 = vrcp.pop %v656
        %v674 = vmul.f32 1.0, %v673
        %v675 = vrcp.pop %v657
        %v676 = vmul.f32 1.0, %v675
        %v677 = vrcp.pop %v658
        %v678 = vmul.f32 1.0, %v677
        %v679 = vrcp.pop %v659
        %v680 = vmul.f32 1.0, %v679
        %v681 = vrcp.pop %v660
        %v682 = vmul.f32 1.0, %v681
        %v683 = vrcp.pop %v661
        %v684 = vmul.f32 1.0, %v683
        %v685 = vrcp.pop %v662
        %v686 = vmul.f32 1.0, %v685
        %v687 = vrcp.pop %v663
        %v688 = vmul.f32 1.0, %v687
        %v689 = vrcp.pop %v664
        %v690 = vmul.f32 1.0, %v689
        %v691 = vrcp.pop %v665
        %v692 = vmul.f32 1.0, %v691
        %v693 = vrcp.pop %v666
        %v694 = vmul.f32 1.0, %v693
        %v695 = vrcp.pop %v667
        %v696 = vmul.f32 1.0, %v695
        %v697 = vrcp.pop %v668
        %v698 = vmul.f32 1.0, %v697
        %v699 = vrcp.pop %v669
        %v700 = vmul.f32 1.0, %v699
        %v701 = vrcp.pop %v670
        %v702 = vmul.f32 1.0, %v701
        %v703 = vmul.f32 %v529, %v672
        %v704 = vmul.f32 %v534, %v674
        %v705 = vmul.f32 %v539, %v676
        %v706 = vmul.f32 %v544, %v678
        %v707 = vmul.f32 %v549, %v680
        %v708 = vmul.f32 %v554, %v682
        %v709 = vmul.f32 %v559, %v684
        %v710 = vmul.f32 %v564, %v686
        %v711 = vmul.f32 %v569, %v688
        %v712 = vmul.f32 %v574, %v690
        %v713 = vmul.f32 %v579, %v692
        %v714 = vmul.f32 %v584, %v694
        %v715 = vmul.f32 %v589, %v696
        %v716 = vmul.f32 %v594, %v698
        %v717 = vmul.f32 %v599, %v700
        %v718 = vmul.f32 %v604, %v702
        %v719 = vld [vmem:[%s3] sm:$0xff]
        %v720 = vld [vmem:[%s3 + $0x8] sm:$0xff]
        %v721 = vld [vmem:[%s4] sm:$0x1]
        %v723 = vlaneseq
        %v724 = vshrl.u32 %v723, 7
        %v725 = vsub.s32 0, %v724
        %v726 = vrot.slane %v721, %v725
        %vm728 = vcmask 130048
        %v730 = vsel %vm728, %v703, 0
        %v733 = vsel %vm728, %v704, 0
        %v736 = vsel %vm728, %v705, 0
        %v739 = vsel %vm728, %v706, 0
        %v742 = vsel %vm728, %v707, 0
        %v745 = vsel %vm728, %v708, 0
        %v748 = vsel %vm728, %v709, 0
        %v751 = vsel %vm728, %v710, 0
        %v754 = vsel %vm728, %v711, 0
        %v757 = vsel %vm728, %v712, 0
        %v760 = vsel %vm728, %v713, 0
        %v763 = vsel %vm728, %v714, 0
        %v766 = vsel %vm728, %v715, 0
        %v769 = vsel %vm728, %v716, 0
        %v772 = vsel %vm728, %v717, 0
        %v775 = vsel %vm728, %v718, 0
        %777 = vmatprep.subr.mxu0 0.0
        %778 = vmatpush1.msra.mxu0 %v719
        %779 = vmatprep.subr.mxu0 0.0
        %780 = vmatpush1.msra.mxu0 %v720
        %781 = vmatprep.subr.mxu0 0.0
        %782 = vmatpush1.msra.mxu0 0.0
        %783 = vmatprep.subr.mxu0 0.0
        %784 = vmatpush1.msra.mxu0 0.0
        %785 = vmatprep.subr.mxu0 0.0
        %786 = vmatpush1.msra.mxu0 0.0
        %787 = vmatprep.subr.mxu0 0.0
        %788 = vmatpush1.msra.mxu0 0.0
        %789 = vmatprep.subr.mxu0 0.0
        %790 = vmatpush1.msra.mxu0 0.0
        %791 = vmatprep.subr.mxu0 0.0
        %792 = vmatpush1.msra.mxu0 0.0
        %793 = vmatprep.subr.mxu0 0.0
        %794 = vmatpush1.msra.mxu0 0.0
        %795 = vmatprep.subr.mxu0 0.0
        %796 = vmatpush1.msra.mxu0 0.0
        %797 = vmatprep.subr.mxu0 0.0
        %798 = vmatpush1.msra.mxu0 0.0
        %799 = vmatprep.subr.mxu0 0.0
        %800 = vmatpush1.msra.mxu0 0.0
        %801 = vmatprep.subr.mxu0 0.0
        %802 = vmatpush1.msra.mxu0 0.0
        %803 = vmatprep.subr.mxu0 0.0
        %804 = vmatpush1.msra.mxu0 0.0
        %805 = vmatprep.subr.mxu0 0.0
        %806 = vmatpush1.msra.mxu0 0.0
        %807 = vmatprep.subr.mxu0 0.0
        %808 = vmatpush1.msra.mxu0 0.0
        %809 = vmatprep.subr.mxu0 0.0
        %810 = vmatpush1.msra.mxu0 0.0
        %811 = vmatprep.subr.mxu0 0.0
        %812 = vmatpush1.msra.mxu0 0.0
        %813 = vmatprep.subr.mxu0 0.0
        %814 = vmatpush1.msra.mxu0 0.0
        %815 = vmatprep.subr.mxu0 0.0
        %816 = vmatpush1.msra.mxu0 0.0
        %817 = vmatprep.subr.mxu0 0.0
        %818 = vmatpush1.msra.mxu0 0.0
        %819 = vmatprep.subr.mxu0 0.0
        %820 = vmatpush1.msra.mxu0 0.0
        %821 = vmatprep.subr.mxu0 0.0
        %822 = vmatpush1.msra.mxu0 0.0
        %823 = vmatprep.subr.mxu0 0.0
        %824 = vmatpush1.msra.mxu0 0.0
        %825 = vmatprep.subr.mxu0 0.0
        %826 = vmatpush1.msra.mxu0 0.0
        %827 = vmatprep.subr.mxu0 0.0
        %828 = vmatpush1.msra.mxu0 0.0
        %829 = vmatprep.subr.mxu0 0.0
        %830 = vmatpush1.msra.mxu0 0.0
        %831 = vmatprep.subr.mxu0 0.0
        %832 = vmatpush1.msra.mxu0 0.0
        %833 = vmatprep.subr.mxu0 0.0
        %834 = vmatpush1.msra.mxu0 0.0
        %835 = vmatprep.subr.mxu0 0.0
        %836 = vmatpush1.msra.mxu0 0.0
        %837 = vmatprep.subr.mxu0 0.0
        %838 = vmatpush1.msra.mxu0 0.0
        %839 = vmatprep.subr.mxu0 0.0
        %840 = vmatpush1.msra.mxu0 0.0
        %841 = vmatprep.mubr.f32.mxu0 0.0
        %842 = vmatmul.mubr.f32.gmra.mrb[0].mxu0 %v730
        %v843 = vpop.f32.mrb[0].mxu0
        %v844 = vadd.f32 %v726, %v843
        %v845 = vpop.f32.mrb[0].mxu0
        %846 = vmatprep.mubr.f32.mxu0 0.0
        %847 = vmatmul.mubr.f32.gmra.mrb[0].mxu0 %v733
        %v848 = vpop.f32.mrb[0].mxu0
        %v849 = vadd.f32 %v726, %v848
        %v850 = vpop.f32.mrb[0].mxu0
        %851 = vmatprep.mubr.f32.mxu0 0.0
        %852 = vmatmul.mubr.f32.gmra.mrb[0].mxu0 %v736
        %v853 = vpop.f32.mrb[0].mxu0
        %v854 = vadd.f32 %v726, %v853
        %v855 = vpop.f32.mrb[0].mxu0
        %856 = vmatprep.mubr.f32.mxu0 0.0
        %857 = vmatmul.mubr.f32.gmra.mrb[0].mxu0 %v739
        %v858 = vpop.f32.mrb[0].mxu0
        %v859 = vadd.f32 %v726, %v858
        %v860 = vpop.f32.mrb[0].mxu0
        %861 = vmatprep.mubr.f32.mxu0 0.0
        %862 = vmatmul.mubr.f32.gmra.mrb[0].mxu0 %v742
        %v863 = vpop.f32.mrb[0].mxu0
        %v864 = vadd.f32 %v726, %v863
        %v865 = vpop.f32.mrb[0].mxu0
        %866 = vmatprep.mubr.f32.mxu0 0.0
        %867 = vmatmul.mubr.f32.gmra.mrb[0].mxu0 %v745
        %v868 = vpop.f32.mrb[0].mxu0
        %v869 = vadd.f32 %v726, %v868
        %v870 = vpop.f32.mrb[0].mxu0
        %871 = vmatprep.mubr.f32.mxu0 0.0
        %872 = vmatmul.mubr.f32.gmra.mrb[0].mxu0 %v748
        %v873 = vpop.f32.mrb[0].mxu0
        %v874 = vadd.f32 %v726, %v873
        %v875 = vpop.f32.mrb[0].mxu0
        %876 = vmatprep.mubr.f32.mxu0 0.0
        %877 = vmatmul.mubr.f32.gmra.mrb[0].mxu0 %v751
        %v878 = vpop.f32.mrb[0].mxu0
        %v879 = vadd.f32 %v726, %v878
        %v880 = vpop.f32.mrb[0].mxu0
        %881 = vmatprep.mubr.f32.mxu0 0.0
        %882 = vmatmul.mubr.f32.gmra.mrb[0].mxu0 %v754
        %v883 = vpop.f32.mrb[0].mxu0
        %v884 = vadd.f32 %v726, %v883
        %v885 = vpop.f32.mrb[0].mxu0
        %886 = vmatprep.mubr.f32.mxu0 0.0
        %887 = vmatmul.mubr.f32.gmra.mrb[0].mxu0 %v757
        %v888 = vpop.f32.mrb[0].mxu0
        %v889 = vadd.f32 %v726, %v888
        %v890 = vpop.f32.mrb[0].mxu0
        %891 = vmatprep.mubr.f32.mxu0 0.0
        %892 = vmatmul.mubr.f32.gmra.mrb[0].mxu0 %v760
        %v893 = vpop.f32.mrb[0].mxu0
        %v894 = vadd.f32 %v726, %v893
        %v895 = vpop.f32.mrb[0].mxu0
        %896 = vmatprep.mubr.f32.mxu0 0.0
        %897 = vmatmul.mubr.f32.gmra.mrb[0].mxu0 %v763
        %v898 = vpop.f32.mrb[0].mxu0
        %v899 = vadd.f32 %v726, %v898
        %v900 = vpop.f32.mrb[0].mxu0
        %901 = vmatprep.mubr.f32.mxu0 0.0
        %902 = vmatmul.mubr.f32.gmra.mrb[0].mxu0 %v766
        %v903 = vpop.f32.mrb[0].mxu0
        %v904 = vadd.f32 %v726, %v903
        %v905 = vpop.f32.mrb[0].mxu0
        %906 = vmatprep.mubr.f32.mxu0 0.0
        %907 = vmatmul.mubr.f32.gmra.mrb[0].mxu0 %v769
        %v908 = vpop.f32.mrb[0].mxu0
        %v909 = vadd.f32 %v726, %v908
        %v910 = vpop.f32.mrb[0].mxu0
        %911 = vmatprep.mubr.f32.mxu0 0.0
        %912 = vmatmul.mubr.f32.gmra.mrb[0].mxu0 %v772
        %v913 = vpop.f32.mrb[0].mxu0
        %v914 = vadd.f32 %v726, %v913
        %v915 = vpop.f32.mrb[0].mxu0
        %916 = vmatprep.mubr.f32.mxu0 0.0
        %917 = vmatmul.mubr.f32.gmra.mrb[0].mxu0 %v775
        %v918 = vpop.f32.mrb[0].mxu0
        %v919 = vadd.f32 %v726, %v918
        %v920 = vpop.f32.mrb[0].mxu0
        %921 = vdwg.mxu0
        %s922 = sld [smem:[#allocation2]]
        %v923 = vstv %s922
        %v924 = vmul.f32 %v923, %v844
        %v925 = vmul.f32 %v923, %v849
        %v926 = vmul.f32 %v923, %v854
        %v927 = vmul.f32 %v923, %v859
        %v928 = vmul.f32 %v923, %v864
        %v929 = vmul.f32 %v923, %v869
        %v930 = vmul.f32 %v923, %v874
        %v931 = vmul.f32 %v923, %v879
        %v932 = vmul.f32 %v923, %v884
        %v933 = vmul.f32 %v923, %v889
        %v934 = vmul.f32 %v923, %v894
        %v935 = vmul.f32 %v923, %v899
        %v936 = vmul.f32 %v923, %v904
        %v937 = vmul.f32 %v923, %v909
        %v938 = vmul.f32 %v923, %v914
        %v939 = vmul.f32 %v923, %v919
        %v940 = vadd.f32 %v274, %v924
        %v941 = vadd.f32 %v275, %v925
        %v942 = vadd.f32 %v276, %v926
        %v943 = vadd.f32 %v277, %v927
        %v944 = vadd.f32 %v278, %v928
        %v945 = vadd.f32 %v279, %v929
        %v946 = vadd.f32 %v280, %v930
        %v947 = vadd.f32 %v281, %v931
        %v948 = vadd.f32 %v282, %v932
        %v949 = vadd.f32 %v283, %v933
        %v950 = vadd.f32 %v284, %v934
        %v951 = vadd.f32 %v285, %v935
        %v952 = vadd.f32 %v286, %v936
        %v953 = vadd.f32 %v287, %v937
        %v954 = vadd.f32 %v288, %v938
        %v955 = vadd.f32 %v289, %v939
        %956 = vst.msk [vmem:[%s254] sm:$0xff] %vm413, %v940
        %957 = vst.msk [vmem:[%s254 + $0x8] sm:$0xff] %vm413, %v941
        %958 = vst.msk [vmem:[%s254 + $0x10] sm:$0xff] %vm413, %v942
        %959 = vst.msk [vmem:[%s254 + $0x18] sm:$0xff] %vm413, %v943
        %960 = vst.msk [vmem:[%s254 + $0x20] sm:$0xff] %vm413, %v944
        %961 = vst.msk [vmem:[%s254 + $0x28] sm:$0xff] %vm413, %v945
        %962 = vst.msk [vmem:[%s254 + $0x30] sm:$0xff] %vm413, %v946
        %963 = vst.msk [vmem:[%s254 + $0x38] sm:$0xff] %vm413, %v947
        %964 = vst.msk [vmem:[%s254 + $0x40] sm:$0xff] %vm413, %v948
        %965 = vst.msk [vmem:[%s254 + $0x48] sm:$0xff] %vm413, %v949
        %966 = vst.msk [vmem:[%s254 + $0x50] sm:$0xff] %vm413, %v950
        %967 = vst.msk [vmem:[%s254 + $0x58] sm:$0xff] %vm413, %v951
        %968 = vst.msk [vmem:[%s254 + $0x60] sm:$0xff] %vm413, %v952
        %969 = vst.msk [vmem:[%s254 + $0x68] sm:$0xff] %vm413, %v953
        %970 = vst.msk [vmem:[%s254 + $0x70] sm:$0xff] %vm413, %v954
        %971 = vst.msk [vmem:[%s254 + $0x78] sm:$0xff] %vm413, %v955
        %s972 = sand.u32 %s157, 1
        %s973 = sand.u32 %s157, 1
        %s974 = smul.addr %s973, 128
        %s975 = scalar_lea.vmem [#allocation3], %s974
        // Predicated region
        $region45: #{tpu_custom_call.1} parent=43 // pred_check
          %p976 = pneg %p167
        $region46: #{tpu_custom_call.1} parent=43 // pred_check_branch
          %978 = sbr.rel (%p976) target = $region48
        $region47: #{tpu_custom_call.1} parent=43 // pred_region
          %s979 = smul.u32 16, %s18
          %s980 = ssub.s32 38, %s979
          %p981 = scmp.lt.s32.totalorder %s980, 16
          %s982 = scalar_select %p981, %s980, 16
          %s983 = smul.u32 128, %s982
          %p984 = scmp.ne.s32.totalorder 0, %s983
          %s985 = smul.addr %s979, 8
          %s986 = scalar_lea.vmem %s6, %s985
          // Predicated region
          $region49: #{tpu_custom_call.1} parent=47 // pred_check
            %p987 = pneg %p984
          $region50: #{tpu_custom_call.1} parent=47 // pred_check_branch
            %989 = sbr.rel (%p987) target = $region52
          $region51: #{tpu_custom_call.1} parent=47 // pred_region
            // Predicated region
            $region53: #{tpu_custom_call.1} parent=51 // pred_check
              _
            $region54: #{tpu_custom_call.1} parent=51 // pred_check_branch
              %991 = sbr.rel (0) target = $region56
            $region55: #{tpu_custom_call.1} parent=51 // pred_region
              // Predicated region
              $region75: #{tpu_custom_call.1} parent=55 // pred_check
                _
              $region76: #{tpu_custom_call.1} parent=55 // pred_check_branch
                %1070 = sbr.rel (0) target = $region78
              $region77: #{tpu_custom_call.1} parent=55 // pred_region
                %s1071 = sshrl.u32 %s982, 4
                // While loop
                $region79: #{tpu_custom_call.1} parent=77 // loop_pre_header
                  _
                $region80: #{tpu_custom_call.1} parent=77 // loop_header
                  %s1073 = sphi 0, %s1075
                  %p1074 = scmp.ge.s32.totalorder %s1073, %s1071
                  %s1078 = sphi 0, %s1115
                  %s1079 = sphi %s975, %s1118
                  %s1080 = sphi %s986, %s1119
                $region81: #{tpu_custom_call.1} parent=77 // loop_header_branch
                  %1077 = sbr.rel (%p1074) target = $region85
                $region82: #{tpu_custom_call.1} parent=77 // loop_body
                  %v1081 = vld [vmem:[%s1079] sm:$0xff]
                  %1082 = vst [vmem:[%s1080] sm:$0xff] %v1081
                  %v1083 = vld [vmem:[%s1079 + $0x8] sm:$0xff]
                  %1084 = vst [vmem:[%s1080 + $0x8] sm:$0xff] %v1083
                  %v1085 = vld [vmem:[%s1079 + $0x10] sm:$0xff]
                  %1086 = vst [vmem:[%s1080 + $0x10] sm:$0xff] %v1085
                  %v1087 = vld [vmem:[%s1079 + $0x18] sm:$0xff]
                  %1088 = vst [vmem:[%s1080 + $0x18] sm:$0xff] %v1087
                  %v1089 = vld [vmem:[%s1079 + $0x20] sm:$0xff]
                  %1090 = vst [vmem:[%s1080 + $0x20] sm:$0xff] %v1089
                  %v1091 = vld [vmem:[%s1079 + $0x28] sm:$0xff]
                  %1092 = vst [vmem:[%s1080 + $0x28] sm:$0xff] %v1091
                  %v1093 = vld [vmem:[%s1079 + $0x30] sm:$0xff]
                  %1094 = vst [vmem:[%s1080 + $0x30] sm:$0xff] %v1093
                  %v1095 = vld [vmem:[%s1079 + $0x38] sm:$0xff]
                  %1096 = vst [vmem:[%s1080 + $0x38] sm:$0xff] %v1095
                  %v1097 = vld [vmem:[%s1079 + $0x40] sm:$0xff]
                  %1098 = vst [vmem:[%s1080 + $0x40] sm:$0xff] %v1097
                  %v1099 = vld [vmem:[%s1079 + $0x48] sm:$0xff]
                  %1100 = vst [vmem:[%s1080 + $0x48] sm:$0xff] %v1099
                  %v1101 = vld [vmem:[%s1079 + $0x50] sm:$0xff]
                  %1102 = vst [vmem:[%s1080 + $0x50] sm:$0xff] %v1101
                  %v1103 = vld [vmem:[%s1079 + $0x58] sm:$0xff]
                  %1104 = vst [vmem:[%s1080 + $0x58] sm:$0xff] %v1103
                  %v1105 = vld [vmem:[%s1079 + $0x60] sm:$0xff]
                  %1106 = vst [vmem:[%s1080 + $0x60] sm:$0xff] %v1105
                  %v1107 = vld [vmem:[%s1079 + $0x68] sm:$0xff]
                  %1108 = vst [vmem:[%s1080 + $0x68] sm:$0xff] %v1107
                  %v1109 = vld [vmem:[%s1079 + $0x70] sm:$0xff]
                  %1110 = vst [vmem:[%s1080 + $0x70] sm:$0xff] %v1109
                  %v1111 = vld [vmem:[%s1079 + $0x78] sm:$0xff]
                  %1112 = vst [vmem:[%s1080 + $0x78] sm:$0xff] %v1111
                  %s1113 = sadd.s32 1, %s1078
                  %p1114 = scmp.ge.s32.totalorder %s1113, %s1071
                  %s1115 = scalar_select %p1114, 0, %s1113
                  %s1116 = smul.u32 %s1115, 128
                  %s1117 = smul.u32 %s1115, 128
                  %s1118 = scalar_lea.vmem %s975, %s1116 [#allocation3]
                  %s1119 = scalar_lea.vmem %s986, %s1117
                $region83: #{tpu_custom_call.1} parent=77 // loop_footer
                  %s1075 = sadd.s32 %s1073, 1
                $region84: #{tpu_custom_call.1} parent=77 // loop_footer_branch
                  %1072 = sbr.rel target = $region80
                $region85: #{tpu_custom_call.1} parent=77 // loop_exit
                  _
                %s1120 = sshrl.u32 %s982, 4
                %s1121 = sand.u32 %s982, 15
                %s1122 = smul.u32 %s1120, 16
                %s1123 = smul.u32 8, %s1122
                %s1124 = scalar_lea.vmem %s975, %s1123 [#allocation3]
                %s1125 = smul.u32 8, %s1122
                %s1126 = scalar_lea.vmem %s986, %s1125
                // While loop
                $region86: #{tpu_custom_call.1} parent=77 // loop_pre_header
                  _
                $region87: #{tpu_custom_call.1} parent=77 // loop_header
                  %s1128 = sphi 0, %s1130
                  %p1129 = scmp.ge.s32.totalorder %s1128, %s1121
                  %s1133 = sphi 0, %s1140
                  %s1134 = sphi %s1124, %s1143
                  %s1135 = sphi %s1126, %s1144
                $region88: #{tpu_custom_call.1} parent=77 // loop_header_branch
                  %1132 = sbr.rel (%p1129) target = $region92
                $region89: #{tpu_custom_call.1} parent=77 // loop_body
                  %v1136 = vld [vmem:[%s1134] sm:$0xff]
                  %1137 = vst [vmem:[%s1135] sm:$0xff] %v1136
                  %s1138 = sadd.s32 1, %s1133
                  %p1139 = scmp.ge.s32.totalorder %s1138, %s1121
                  %s1140 = scalar_select %p1139, 0, %s1138
                  %s1141 = smul.u32 %s1140, 8
                  %s1142 = smul.u32 %s1140, 8
                  %s1143 = scalar_lea.vmem %s1124, %s1141 [#allocation3]
                  %s1144 = scalar_lea.vmem %s1126, %s1142
                $region90: #{tpu_custom_call.1} parent=77 // loop_footer
                  %s1130 = sadd.s32 %s1128, 1
                $region91: #{tpu_custom_call.1} parent=77 // loop_footer_branch
                  %1127 = sbr.rel target = $region87
                $region92: #{tpu_custom_call.1} parent=77 // loop_exit
                  _
              $region78: #{tpu_custom_call.1} parent=55 // pred_fallthru
                _
              // Predicated region
              $region93: #{tpu_custom_call.1} parent=55 // pred_check
                _
              $region94: #{tpu_custom_call.1} parent=55 // pred_check_branch
                %1146 = sbr.rel target = $region96
              $region95: #{tpu_custom_call.1} parent=55 // pred_region
                _
              $region96: #{tpu_custom_call.1} parent=55 // pred_fallthru
                _
            $region56: #{tpu_custom_call.1} parent=51 // pred_fallthru
              _
            // Predicated region
            $region57: #{tpu_custom_call.1} parent=51 // pred_check
              _
            $region58: #{tpu_custom_call.1} parent=51 // pred_check_branch
              %993 = sbr.rel target = $region60
            $region59: #{tpu_custom_call.1} parent=51 // pred_region
              %s995 = sshrl.u32 %s982, 4
              // While loop
              $region61: #{tpu_custom_call.1} parent=59 // loop_pre_header
                _
              $region62: #{tpu_custom_call.1} parent=59 // loop_header
                %s997 = sphi 0, %s999
                %p998 = scmp.ge.s32.totalorder %s997, %s995
                %s1002 = sphi 0, %s1039
                %s1003 = sphi %s975, %s1042
                %s1004 = sphi %s986, %s1043
              $region63: #{tpu_custom_call.1} parent=59 // loop_header_branch
                %1001 = sbr.rel (%p998) target = $region67
              $region64: #{tpu_custom_call.1} parent=59 // loop_body
                %v1005 = vld [vmem:[%s1003] sm:$0xff]
                %1006 = vst [vmem:[%s1004] sm:$0xff] %v1005
                %v1007 = vld [vmem:[%s1003 + $0x8] sm:$0xff]
                %1008 = vst [vmem:[%s1004 + $0x8] sm:$0xff] %v1007
                %v1009 = vld [vmem:[%s1003 + $0x10] sm:$0xff]
                %1010 = vst [vmem:[%s1004 + $0x10] sm:$0xff] %v1009
                %v1011 = vld [vmem:[%s1003 + $0x18] sm:$0xff]
                %1012 = vst [vmem:[%s1004 + $0x18] sm:$0xff] %v1011
                %v1013 = vld [vmem:[%s1003 + $0x20] sm:$0xff]
                %1014 = vst [vmem:[%s1004 + $0x20] sm:$0xff] %v1013
                %v1015 = vld [vmem:[%s1003 + $0x28] sm:$0xff]
                %1016 = vst [vmem:[%s1004 + $0x28] sm:$0xff] %v1015
                %v1017 = vld [vmem:[%s1003 + $0x30] sm:$0xff]
                %1018 = vst [vmem:[%s1004 + $0x30] sm:$0xff] %v1017
                %v1019 = vld [vmem:[%s1003 + $0x38] sm:$0xff]
                %1020 = vst [vmem:[%s1004 + $0x38] sm:$0xff] %v1019
                %v1021 = vld [vmem:[%s1003 + $0x40] sm:$0xff]
                %1022 = vst [vmem:[%s1004 + $0x40] sm:$0xff] %v1021
                %v1023 = vld [vmem:[%s1003 + $0x48] sm:$0xff]
                %1024 = vst [vmem:[%s1004 + $0x48] sm:$0xff] %v1023
                %v1025 = vld [vmem:[%s1003 + $0x50] sm:$0xff]
                %1026 = vst [vmem:[%s1004 + $0x50] sm:$0xff] %v1025
                %v1027 = vld [vmem:[%s1003 + $0x58] sm:$0xff]
                %1028 = vst [vmem:[%s1004 + $0x58] sm:$0xff] %v1027
                %v1029 = vld [vmem:[%s1003 + $0x60] sm:$0xff]
                %1030 = vst [vmem:[%s1004 + $0x60] sm:$0xff] %v1029
                %v1031 = vld [vmem:[%s1003 + $0x68] sm:$0xff]
                %1032 = vst [vmem:[%s1004 + $0x68] sm:$0xff] %v1031
                %v1033 = vld [vmem:[%s1003 + $0x70] sm:$0xff]
                %1034 = vst [vmem:[%s1004 + $0x70] sm:$0xff] %v1033
                %v1035 = vld [vmem:[%s1003 + $0x78] sm:$0xff]
                %1036 = vst [vmem:[%s1004 + $0x78] sm:$0xff] %v1035
                %s1037 = sadd.s32 1, %s1002
                %p1038 = scmp.ge.s32.totalorder %s1037, %s995
                %s1039 = scalar_select %p1038, 0, %s1037
                %s1040 = smul.u32 %s1039, 128
                %s1041 = smul.u32 %s1039, 128
                %s1042 = scalar_lea.vmem %s975, %s1040 [#allocation3]
                %s1043 = scalar_lea.vmem %s986, %s1041
              $region65: #{tpu_custom_call.1} parent=59 // loop_footer
                %s999 = sadd.s32 %s997, 1
              $region66: #{tpu_custom_call.1} parent=59 // loop_footer_branch
                %996 = sbr.rel target = $region62
              $region67: #{tpu_custom_call.1} parent=59 // loop_exit
                _
              %s1044 = sshrl.u32 %s982, 4
              %s1045 = sand.u32 %s982, 15
              %s1046 = smul.u32 %s1044, 16
              %s1047 = smul.u32 8, %s1046
              %s1048 = scalar_lea.vmem %s975, %s1047 [#allocation3]
              %s1049 = smul.u32 8, %s1046
              %s1050 = scalar_lea.vmem %s986, %s1049
              // While loop
              $region68: #{tpu_custom_call.1} parent=59 // loop_pre_header
                _
              $region69: #{tpu_custom_call.1} parent=59 // loop_header
                %s1052 = sphi 0, %s1054
                %p1053 = scmp.ge.s32.totalorder %s1052, %s1045
                %s1057 = sphi 0, %s1064
                %s1058 = sphi %s1048, %s1067
                %s1059 = sphi %s1050, %s1068
              $region70: #{tpu_custom_call.1} parent=59 // loop_header_branch
                %1056 = sbr.rel (%p1053) target = $region74
              $region71: #{tpu_custom_call.1} parent=59 // loop_body
                %v1060 = vld [vmem:[%s1058] sm:$0xff]
                %1061 = vst [vmem:[%s1059] sm:$0xff] %v1060
                %s1062 = sadd.s32 1, %s1057
                %p1063 = scmp.ge.s32.totalorder %s1062, %s1045
                %s1064 = scalar_select %p1063, 0, %s1062
                %s1065 = smul.u32 %s1064, 8
                %s1066 = smul.u32 %s1064, 8
                %s1067 = scalar_lea.vmem %s1048, %s1065 [#allocation3]
                %s1068 = scalar_lea.vmem %s1050, %s1066
              $region72: #{tpu_custom_call.1} parent=59 // loop_footer
                %s1054 = sadd.s32 %s1052, 1
              $region73: #{tpu_custom_call.1} parent=59 // loop_footer_branch
                %1051 = sbr.rel target = $region69
              $region74: #{tpu_custom_call.1} parent=59 // loop_exit
                _
            $region60: #{tpu_custom_call.1} parent=51 // pred_fallthru
              _
          $region52: #{tpu_custom_call.1} parent=47 // pred_fallthru
            _
          %1147 = vnop
        $region48: #{tpu_custom_call.1} parent=43 // pred_fallthru
          _
      $region44: #{tpu_custom_call.1} parent=5 // pred_fallthru
        _
      %p1148 = scmp.le.s32.totalorder 2, %s13
      // Predicated region
      $region97: #{tpu_custom_call.1} parent=5 // pred_check
        %p1149 = pneg %p1148
      $region98: #{tpu_custom_call.1} parent=5 // pred_check_branch
        %1151 = sbr.rel (%p1149) target = $region100
      $region99: #{tpu_custom_call.1} parent=5 // pred_region
        %s1152 = ssub.s32 %s13, 2
        // Predicated region
        $region101: #{tpu_custom_call.1} parent=99 // pred_check
          %p1153 = pneg %p173
        $region102: #{tpu_custom_call.1} parent=99 // pred_check_branch
          %1155 = sbr.rel (%p1153) target = $region104
        $region103: #{tpu_custom_call.1} parent=99 // pred_region
          %s1156 = sand.u32 %s158, 1
          %s1157 = sand.u32 %s158, 1
          %s1158 = smul.addr %s1157, 128
          %s1159 = scalar_lea.vmem [#allocation3], %s1158
        $region104: #{tpu_custom_call.1} parent=99 // pred_fallthru
          _
      $region100: #{tpu_custom_call.1} parent=5 // pred_fallthru
        _
    $region6: #{tpu_custom_call.1} parent=1 // loop_footer
      %s17 = sadd.s32 1, %s13
    $region7: #{tpu_custom_call.1} parent=1 // loop_footer_branch
      %12 = sbr.rel target = $region3
    $region8: #{tpu_custom_call.1} parent=1 // loop_exit
      _

</llo_original>
